<compile_context>
chip_gen: v6e
topology: v6e:2x2x1
jax: 0.10.0
libtpu: 0.0.40
codegen_flags: <defaults>
</compile_context>

<pallas_src>
import functools
import math

import jax
import jax.numpy as jnp
from jax import lax
from jax.experimental import pallas as pl
from jax.experimental.pallas import tpu as pltpu


# --------------------------------------------------------------------------- #
# Helpers
# --------------------------------------------------------------------------- #
def _pick_tile(n, preferred):
    """Largest candidate that divides n (falls back to n itself)."""
    for t in preferred:
        if t <= n and n % t == 0:
            return t
    return n


def _vmem_limit_bytes():
    """Generation-aware VMEM limit: ~75% of physical, capped at 100 MiB."""
    cap = 64 * 1024 * 1024
    try:
        info = pltpu.get_tpu_info()
        cap = int(getattr(info, "vmem_capacity_bytes", cap))
    except Exception:
        pass
    return max(32 * 1024 * 1024, min(int(cap * 0.75), 100 * 1024 * 1024))


def _const_spec(p):
    """BlockSpec for a grid-invariant parameter: full block, single-buffered."""
    nd = p.ndim
    kwargs = {}
    if hasattr(pl, "Buffered"):
        kwargs["pipeline_mode"] = pl.Buffered(buffer_count=1)
    return pl.BlockSpec(p.shape, lambda *args, _nd=nd: (0,) * _nd, **kwargs)


def _layer_norm(y, gamma, beta, eps=1e-5):
    # Single-pass variance: E[y^2] - mu^2 (halves XLU reduction passes).
    mu = jnp.mean(y, axis=-1, keepdims=True)
    var = jnp.maximum(jnp.mean(y * y, axis=-1, keepdims=True) - mu * mu, 0.0)
    return (y - mu) * lax.rsqrt(var + eps) * gamma + beta


# --------------------------------------------------------------------------- #
# Kernel 1: fused QKV projection over flattened (N*S) rows
# --------------------------------------------------------------------------- #
def _qkv_kernel(x_ref, w_ref, b_ref, o_ref):
    acc = jnp.dot(x_ref[...].astype(jnp.bfloat16), w_ref[...],
                  preferred_element_type=jnp.float32) + b_ref[...]
    o_ref[...] = acc.astype(o_ref.dtype)


def _qkv_projection(x2d, wqkv, bqkv):
    M, E = x2d.shape
    E3 = wqkv.shape[1]
    tm = _pick_tile(M, (512, 256, 128, 64, 32, 16, 8))
    return pl.pallas_call(
        _qkv_kernel,
        out_shape=jax.ShapeDtypeStruct((M, E3), jnp.bfloat16),
        grid_spec=pltpu.PrefetchScalarGridSpec(
            num_scalar_prefetch=0,
            grid=(M // tm,),
            in_specs=[pl.BlockSpec((tm, E), lambda i: (i, 0)),
                      _const_spec(wqkv), _const_spec(bqkv)],
            out_specs=pl.BlockSpec((tm, E3), lambda i: (i, 0)),
        ),
        compiler_params=pltpu.CompilerParams(
            dimension_semantics=("parallel",),
            vmem_limit_bytes=_vmem_limit_bytes(),
        ),
        cost_estimate=pl.CostEstimate(
            flops=int(2 * M * E * E3),
            transcendentals=0,
            bytes_accessed=int(M * E * 4 + E * E3 * 2 + E3 * 4 + M * E3 * 2),
        ),
    )(x2d, wqkv, bqkv)


# --------------------------------------------------------------------------- #
# Kernel 2: flash attention (online softmax over KV tiles)
# --------------------------------------------------------------------------- #
def _flash_attn_kernel(q_ref, k_ref, v_ref, o_ref, m_sc, l_sc, acc_sc):
    ki = pl.program_id(3)

    @pl.when(ki == 0)
    def _():
        m_sc[...] = jnp.full(m_sc.shape, -jnp.inf, jnp.float32)
        l_sc[...] = jnp.zeros(l_sc.shape, jnp.float32)
        acc_sc[...] = jnp.zeros(acc_sc.shape, jnp.float32)

    q = q_ref[0]                                 # (Tq, Dh) bf16, scale pre-folded
    k = k_ref[0]                                 # (Tk, Dh) bf16
    s = lax.dot_general(q, k, (((1,), (1,)), ((), ())),
                        preferred_element_type=jnp.float32)   # (Tq, Tk)

    m_prev = m_sc[...]
    m_new = jnp.maximum(m_prev, jnp.max(s, axis=-1, keepdims=True))
    alpha = jnp.exp(m_prev - m_new)
    p = jnp.exp(s - m_new)
    l_sc[...] = alpha * l_sc[...] + jnp.sum(p, axis=-1, keepdims=True)
    acc_sc[...] = alpha * acc_sc[...] + jnp.dot(
        p.astype(jnp.bfloat16), v_ref[0], preferred_element_type=jnp.float32)
    m_sc[...] = m_new

    @pl.when(ki == pl.num_programs(3) - 1)
    def _():
        o_ref[0] = (acc_sc[...] *
                    pl.reciprocal(l_sc[...], approx=True)).astype(o_ref.dtype)


def _flash_attention(qkv, *, num_heads):
    N, S, E3 = qkv.shape
    E = E3 // 3
    Dh = E // num_heads
    H = num_heads
    tq = _pick_tile(S, (256, 128, 64, 32, 16, 8))
    tk = _pick_tile(S, (512, 256, 128, 64, 32, 16, 8))

    q_spec = pl.BlockSpec((1, tq, Dh), lambda n, h, qi, ki: (n, qi, h))
    k_spec = pl.BlockSpec((1, tk, Dh), lambda n, h, qi, ki: (n, ki, H + h))
    v_spec = pl.BlockSpec((1, tk, Dh), lambda n, h, qi, ki: (n, ki, 2 * H + h))
    o_spec = pl.BlockSpec((1, tq, Dh), lambda n, h, qi, ki: (n, qi, h))

    return pl.pallas_call(
        _flash_attn_kernel,
        out_shape=jax.ShapeDtypeStruct((N, S, E), jnp.bfloat16),
        grid_spec=pltpu.PrefetchScalarGridSpec(
            num_scalar_prefetch=0,
            grid=(N, H, S // tq, S // tk),
            in_specs=[q_spec, k_spec, v_spec],
            out_specs=o_spec,
            scratch_shapes=[pltpu.VMEM((tq, 1), jnp.float32),
                            pltpu.VMEM((tq, 1), jnp.float32),
                            pltpu.VMEM((tq, Dh), jnp.float32)],
        ),
        compiler_params=pltpu.CompilerParams(
            dimension_semantics=("parallel", "parallel", "parallel", "arbitrary"),
            vmem_limit_bytes=_vmem_limit_bytes(),
        ),
        cost_estimate=pl.CostEstimate(
            flops=int(4 * N * H * S * S * Dh),
            transcendentals=int(N * H * S * S),
            bytes_accessed=int(N * S * E3 * 2 * (S // tq) + N * S * E * 2),
        ),
    )(qkv, qkv, qkv)


# --------------------------------------------------------------------------- #
# Kernel 3: W_o projection + residual + LN1 + FFN + residual + LN2
# --------------------------------------------------------------------------- #
def _post_attn_kernel(ctx_ref, x_ref, wo_ref, bo_ref, w1_ref, b1_ref,
                      w2_ref, b2_ref, g1_ref, be1_ref, g2_ref, be2_ref, o_ref):
    # Single K=E output projection (MXU reduction, replaces per-head VPU accum).
    attn_out = jnp.dot(ctx_ref[...], wo_ref[...],
                       preferred_element_type=jnp.float32) + bo_ref[...]
    y = _layer_norm(x_ref[...] + attn_out, g1_ref[...], be1_ref[...])

    h1 = jnp.dot(y.astype(jnp.bfloat16), w1_ref[...],
                 preferred_element_type=jnp.float32) + b1_ref[...]
    h1 = jnp.maximum(h1, 0.0)
    ff = jnp.dot(h1.astype(jnp.bfloat16), w2_ref[...],
                 preferred_element_type=jnp.float32) + b2_ref[...]

    o_ref[...] = _layer_norm(y + ff, g2_ref[...], be2_ref[...])


def _post_attention(ctx2d, x2d, weights):
    M, E = x2d.shape
    HID = weights[2].shape[1]  # w1
    tm = _pick_tile(M, (512, 256, 128, 64, 32, 16, 8))

    in_specs = [pl.BlockSpec((tm, E), lambda i: (i, 0)),
                pl.BlockSpec((tm, E), lambda i: (i, 0))] + [
                    _const_spec(w) for w in weights]

    flops = 2 * M * E * E + 4 * M * E * HID
    byt = (M * E * 2 + M * E * 4 + M * E * 4 +
           E * E * 2 + E * HID * 2 + HID * E * 2 + 8 * E * 4 + HID * 4)

    return pl.pallas_call(
        _post_attn_kernel,
        out_shape=jax.ShapeDtypeStruct((M, E), jnp.float32),
        grid_spec=pltpu.PrefetchScalarGridSpec(
            num_scalar_prefetch=0,
            grid=(M // tm,),
            in_specs=in_specs,
            out_specs=pl.BlockSpec((tm, E), lambda i: (i, 0)),
        ),
        compiler_params=pltpu.CompilerParams(
            dimension_semantics=("parallel",),
            vmem_limit_bytes=_vmem_limit_bytes(),
        ),
        cost_estimate=pl.CostEstimate(
            flops=int(flops), transcendentals=int(2 * M), bytes_accessed=int(byt)),
    )(ctx2d, x2d, *weights)


# --------------------------------------------------------------------------- #
# Full block
# --------------------------------------------------------------------------- #
def transformer_block(x, params, *, num_heads):
    N, S, E = x.shape
    assert E % num_heads == 0, "embed_dim must be divisible by num_heads"
    Dh = E // num_heads
    assert Dh % 128 == 0, "head_dim must be a multiple of 128 for lane-aligned head slices"
    scale = 1.0 / math.sqrt(Dh)

    # Fused QKV weight/bias with the softmax scale folded into the Q columns.
    # (Folding before the bf16 cast rounds slightly differently than PyTorch,
    # which scales after the matmul; covered by the test tolerance.)
    wqkv = jnp.concatenate(
        [params["wq"] * scale, params["wk"], params["wv"]], axis=1).astype(jnp.bfloat16)
    bqkv = jnp.concatenate([params["bq"] * scale, params["bk"], params["bv"]], axis=1)

    M = N * S
    x2d = x.reshape(M, E)

    # 1) QKV projection over row tiles.
    qkv = _qkv_projection(x2d, wqkv, bqkv).reshape(N, S, 3 * E)

    # 2) Flash attention -> per-head contexts land in (N, S, E) column slices.
    ctx = _flash_attention(qkv, num_heads=num_heads)

    # 3) W_o + residual + LN1 + FFN + residual + LN2 over row tiles.
    post_weights = [
        params["wo"].astype(jnp.bfloat16), params["bo"],
        params["w1"].astype(jnp.bfloat16), params["b1"],
        params["w2"].astype(jnp.bfloat16), params["b2"],
        params["g1"], params["be1"], params["g2"], params["be2"],
    ]
    out2d = _post_attention(ctx.reshape(M, E), x2d, post_weights)
    return out2d.reshape(N, S, E)


# --------------------------------------------------------------------------- #
# Parameters + pure-JAX reference
# --------------------------------------------------------------------------- #
def init_params(key, embed_dim, num_heads, hidden_dim):
    """Deterministic synthetic parameters. Linear weights stored pre-transposed
    so y = x @ W + b (equivalent to PyTorch y = x @ W_pt.T + b)."""
    keys = jax.random.split(key, 12)
    s_e = 1.0 / (embed_dim ** 0.5)
    s_h = 1.0 / (hidden_dim ** 0.5)

    def lin(kw, kb, fan_in, fan_out, scale):
        w = jax.random.uniform(kw, (fan_in, fan_out), jnp.float32, -scale, scale)
        b = jax.random.uniform(kb, (1, fan_out), jnp.float32, -scale, scale)
        return w, b

    wq, bq = lin(keys[0], keys[1], embed_dim, embed_dim, s_e)
    wk, bk = lin(keys[2], keys[3], embed_dim, embed_dim, s_e)
    wv, bv = lin(keys[4], keys[5], embed_dim, embed_dim, s_e)
    wo, bo = lin(keys[6], keys[7], embed_dim, embed_dim, s_e)
    w1, b1 = lin(keys[8], keys[9], embed_dim, hidden_dim, s_e)
    w2, b2 = lin(keys[10], keys[11], hidden_dim, embed_dim, s_h)

    return {
        "wq": wq, "bq": bq, "wk": wk, "bk": bk, "wv": wv, "bv": bv,
        "wo": wo, "bo": bo, "w1": w1, "b1": b1, "w2": w2, "b2": b2,
        # LayerNorm affine params (PyTorch default init: weight=1, bias=0)
        "g1": jnp.ones((1, embed_dim), jnp.float32),
        "be1": jnp.zeros((1, embed_dim), jnp.float32),
        "g2": jnp.ones((1, embed_dim), jnp.float32),
        "be2": jnp.zeros((1, embed_dim), jnp.float32),
    }


def reference_forward(x, params, *, num_heads):
    """Pure-JAX f32 reference mirroring the PyTorch module exactly."""
    N, S, E = x.shape
    Dh = E // num_heads

    def ln(y, g, b, eps=1e-5):
        mu = jnp.mean(y, axis=-1, keepdims=True)
        var = jnp.mean((y - mu) ** 2, axis=-1, keepdims=True)
        return (y - mu) / jnp.sqrt(var + eps) * g + b

    q = x @ params["wq"] + params["bq"]
    k = x @ params["wk"] + params["bk"]
    v = x @ params["wv"] + params["bv"]
    q = q.reshape(N, S, num_heads, Dh).transpose(0, 2, 1, 3)
    k = k.reshape(N, S, num_heads, Dh).transpose(0, 2, 1, 3)
    v = v.reshape(N, S, num_heads, Dh).transpose(0, 2, 1, 3)
    energy = jnp.einsum("nhqd,nhkd->nhqk", q, k)
    attn = jax.nn.softmax(energy / (Dh ** 0.5), axis=3)
    out = jnp.einsum("nhql,nhld->nhqd", attn, v).transpose(0, 2, 1, 3).reshape(N, S, E)
    out = out @ params["wo"] + params["bo"]
    y = ln(x + out, params["g1"], params["be1"])
    ff = jnp.maximum(y @ params["w1"] + params["b1"], 0.0) @ params["w2"] + params["b2"]
    return ln(y + ff, params["g2"], params["be2"])


if __name__ == "__main__":
    # Small but TPU-friendly: S=128 makes softmax KV reductions lane-dense,
    # E=256 / HID=512 are lane multiples, Dh=128 gives aligned head slices.
    N, S, E, H, HID = 2, 128, 256, 2, 512

    key = jax.random.PRNGKey(0)
    kx, kp = jax.random.split(key)
    x = jax.random.normal(kx, (N, S, E), jnp.float32)
    params = init_params(kp, E, H, HID)

    out = jax.block_until_ready(transformer_block(x, params, num_heads=H))
    ref = reference_forward(x, params, num_heads=H)

    assert out.shape == (N, S, E)
    # bf16 MXU operands (f32 accumulation) + approx reciprocal vs a pure-f32
    # reference -> loose tolerance.
    assert jnp.allclose(out, ref, atol=5e-2, rtol=5e-2), "Pallas output mismatch vs JAX reference"

    print("KERNEL_OK")
</pallas_src>

<mosaic_0001>
module attributes {stable_mosaic.version = 11 : i64} {
  func.func @_qkv_kernel(%arg0: i32, %arg1: memref<256x256xf32, #tpu.memory_space<vmem>>, %arg2: memref<256x768xbf16, #tpu.memory_space<vmem>>, %arg3: memref<1x768xf32, #tpu.memory_space<vmem>>, %arg4: memref<256x768xbf16, #tpu.memory_space<vmem>>) attributes {dimension_semantics = [#tpu.dimension_semantics<parallel>], iteration_bounds = array<i64: 1>, scalar_prefetch = 0 : i64, scratch_operands = 0 : i64, tpu.core_type = #tpu.core_type<tc>, window_params = [{transform_indices = @transform_0, window_bounds = array<i64: 256, 256>}, {pipeline_mode = #tpu.pipeline_mode<synchronous>, transform_indices = @transform_1, window_bounds = array<i64: 256, 768>}, {pipeline_mode = #tpu.pipeline_mode<synchronous>, transform_indices = @transform_2, window_bounds = array<i64: 1, 768>}, {transform_indices = @transform_3, window_bounds = array<i64: 256, 768>}]} {
    %c0 = arith.constant 0 : index
    %c0_0 = arith.constant 0 : index
    %0 = vector.load %arg1[%c0, %c0_0] : memref<256x256xf32, #tpu.memory_space<vmem>>, vector<256x256xf32>
    %1 = arith.truncf %0 : vector<256x256xf32> to vector<256x256xbf16>
    %c0_1 = arith.constant 0 : index
    %c0_2 = arith.constant 0 : index
    %2 = vector.load %arg2[%c0_1, %c0_2] : memref<256x768xbf16, #tpu.memory_space<vmem>>, vector<256x768xbf16>
    %cst = arith.constant dense<0.000000e+00> : vector<256x768xf32>
    %3 = tpu.matmul %1, %2, %cst {dimension_numbers = #tpu.dot_dimension_numbers<[1], [0], [0], [1], [0, 0, 1, 1], [], []>} : vector<256x256xbf16>, vector<256x768xbf16>, vector<256x768xf32> -> vector<256x768xf32>
    %c0_3 = arith.constant 0 : index
    %c0_4 = arith.constant 0 : index
    %4 = vector.load %arg3[%c0_3, %c0_4] : memref<1x768xf32, #tpu.memory_space<vmem>>, vector<1x768xf32>
    %5 = vector.broadcast %4 : vector<1x768xf32> to vector<256x768xf32>
    %6 = arith.addf %3, %5 : vector<256x768xf32>
    %7 = arith.truncf %6 : vector<256x768xf32> to vector<256x768xbf16>
    %c0_5 = arith.constant 0 : index
    %c0_6 = arith.constant 0 : index
    %8 = vector.load %arg4[%c0_5, %c0_6] : memref<256x768xbf16, #tpu.memory_space<vmem>>, vector<256x768xbf16>
    tpu.vector_store %arg4[%c0_5, %c0_6], %7 {strides = array<i32>} : memref<256x768xbf16, #tpu.memory_space<vmem>>, vector<256x768xbf16>,
    return
  }
  func.func @transform_0(%arg0: i32) -> (i32, i32) {
    %c0_i32 = arith.constant 0 : i32
    %c0_i32_0 = arith.constant 0 : i32
    return %arg0, %c0_i32 : i32, i32
  }
  func.func @transform_1(%arg0: i32) -> (i32, i32) {
    %c0_i32 = arith.constant 0 : i32
    %c0_i32_0 = arith.constant 0 : i32
    %c0_i32_1 = arith.constant 0 : i32
    return %c0_i32, %c0_i32_0 : i32, i32
  }
  func.func @transform_2(%arg0: i32) -> (i32, i32) {
    %c0_i32 = arith.constant 0 : i32
    %c0_i32_0 = arith.constant 0 : i32
    %c0_i32_1 = arith.constant 0 : i32
    return %c0_i32, %c0_i32_0 : i32, i32
  }
  func.func @transform_3(%arg0: i32) -> (i32, i32) {
    %c0_i32 = arith.constant 0 : i32
    %c0_i32_0 = arith.constant 0 : i32
    return %arg0, %c0_i32 : i32, i32
  }
}

</mosaic_0001>

<llo_original>
// kernel: tpu_custom_call.1
$region0: #{tpu_custom_call.1}
  #allocation0 [shape = 'u32[]', space=smem, size = 0x4, offset = 0x4, fixed_abs, tag = 'smem constant byte address 0x4 - core index']
  #allocation1 [shape = 'u32[144,128]{1,0:T(1,128)}', space=vmem, size = 0x12000, scoped, tag = 'internal scratch']
  %s0 = inlined_call_operand.hbm [shape: f32[256,256], index: 0, kind: input, shape index: {}]
  %s1 = inlined_call_operand.hbm [shape: bf16[256,768], index: 1, kind: input, shape index: {}]
  %s2 = inlined_call_operand.hbm [shape: f32[1,768], index: 2, kind: input, shape index: {}]
  %s3 = inlined_call_operand.hbm [shape: bf16[256,768], index: 3, kind: output, shape index: {}]
  %s4 = sld [smem:[#allocation0]]
  $region34: #{tpu_custom_call.1} parent=0
    _
  %s6 = ssub.s32 1, %s4
  %s7 = scalar_select 0, %s6, %s4
  $region1: #{tpu_custom_call.1} parent=0
    #allocation2 [shape = 'u8[262144]{0}', space=vmem, size = 0x40000, scoped, tag = 'input window, operand 0, single buffered']
    #allocation3 [shape = 's32[1]{0}', space=sflag, size = 0x4, scoped, tag = 'scoped memory for tpu_custom_call.1']
    #allocation4 [shape = 's32[1]{0}', space=sflag, size = 0x4, scoped, tag = 'scoped memory for tpu_custom_call.1']
    #allocation5 [shape = 'u8[393216]{0}', space=vmem, size = 0x60000, scoped, tag = 'input window, operand 1, single buffered']
    #allocation6 [shape = 's32[1]{0}', space=sflag, size = 0x4, scoped, tag = 'scoped memory for tpu_custom_call.1']
    #allocation7 [shape = 'u8[3072]{0}', space=vmem, size = 0xc00, scoped, tag = 'input window, operand 2, single buffered']
    #allocation8 [shape = 'u8[393216]{0}', space=vmem, size = 0x60000, scoped, tag = 'output window, operand 0, single buffered']
    %8 = vsyncpa [#allocation3], 0
    %9 = vsyncpa [#allocation6], 0
    %10 = vsyncpa [#allocation4], 0
    // Predicated region
    $region2: #{tpu_custom_call.1} parent=1 // pred_check
      _
    $region3: #{tpu_custom_call.1} parent=1 // pred_check_branch
      %12 = sbr.rel (0) target = $region5
    $region4: #{tpu_custom_call.1} parent=1 // pred_region
      %s14 = ssub.s32 8192, 8192
      %15 = vsyncadd [#allocation3], %s14
      %s16 = sshll.u32 [#allocation2], 4
      %s17 = int_to_ptr.vmem [resolvable:$true] %s16
      %22 = dma.hbm_to_vmem [thread:$0]  %s0, 8192, %s17, [#allocation3], 256, 256, 16
    $region5: #{tpu_custom_call.1} parent=1 // pred_fallthru
      _
    // Predicated region
    $region6: #{tpu_custom_call.1} parent=1 // pred_check
      _
    $region7: #{tpu_custom_call.1} parent=1 // pred_check_branch
      %24 = sbr.rel (0) target = $region9
    $region8: #{tpu_custom_call.1} parent=1 // pred_region
      %s26 = ssub.s32 12288, 12288
      %27 = vsyncadd [#allocation6], %s26
      %s28 = sshll.u32 [#allocation5], 4
      %s29 = int_to_ptr.vmem [resolvable:$true] %s28
      %34 = dma.hbm_to_vmem [thread:$0]  %s1, 12288, %s29, [#allocation6], 384, 384, 24
    $region9: #{tpu_custom_call.1} parent=1 // pred_fallthru
      _
    // Predicated region
    $region10: #{tpu_custom_call.1} parent=1 // pred_check
      _
    $region11: #{tpu_custom_call.1} parent=1 // pred_check_branch
      %36 = sbr.rel (0) target = $region13
    $region12: #{tpu_custom_call.1} parent=1 // pred_region
      %s38 = ssub.s32 96, 96
      %39 = vsyncadd [#allocation6], %s38
      %s41 = sshll.u32 [#allocation7], 4
      %s42 = int_to_ptr.vmem [resolvable:$true] %s41
      %44 = dma.hbm_to_vmem [thread:$0]  %s2, 96, %s42, [#allocation6]
    $region13: #{tpu_custom_call.1} parent=1 // pred_fallthru
      _
    // Predicated region
    $region14: #{tpu_custom_call.1} parent=1 // pred_check
      _
    $region15: #{tpu_custom_call.1} parent=1 // pred_check_branch
      %46 = sbr.rel (0) target = $region17
    $region16: #{tpu_custom_call.1} parent=1 // pred_region
      %47 = dma.done [#allocation3], 8192
    $region17: #{tpu_custom_call.1} parent=1 // pred_fallthru
      _
    // Predicated region
    $region18: #{tpu_custom_call.1} parent=1 // pred_check
      _
    $region19: #{tpu_custom_call.1} parent=1 // pred_check_branch
      %49 = sbr.rel (0) target = $region21
    $region20: #{tpu_custom_call.1} parent=1 // pred_region
      %50 = dma.done [#allocation6], 12288
    $region21: #{tpu_custom_call.1} parent=1 // pred_fallthru
      _
    // Predicated region
    $region22: #{tpu_custom_call.1} parent=1 // pred_check
      _
    $region23: #{tpu_custom_call.1} parent=1 // pred_check_branch
      %52 = sbr.rel (0) target = $region25
    $region24: #{tpu_custom_call.1} parent=1 // pred_region
      %53 = dma.done [#allocation6], 96
    $region25: #{tpu_custom_call.1} parent=1 // pred_fallthru
      _
    %v54 = vld [vmem:[#allocation2] sm:$0xff]
    %v55 = vld [vmem:[#allocation2 + $0x8] sm:$0xff]
    %v56 = vld [vmem:[#allocation2 + $0x10] sm:$0xff]
    %v57 = vld [vmem:[#allocation2 + $0x18] sm:$0xff]
    %v58 = vld [vmem:[#allocation2 + $0x20] sm:$0xff]
    %v59 = vld [vmem:[#allocation2 + $0x28] sm:$0xff]
    %v60 = vld [vmem:[#allocation2 + $0x30] sm:$0xff]
    %v61 = vld [vmem:[#allocation2 + $0x38] sm:$0xff]
    %v62 = vld [vmem:[#allocation2 + $0x40] sm:$0xff]
    %v63 = vld [vmem:[#allocation2 + $0x48] sm:$0xff]
    %v64 = vld [vmem:[#allocation2 + $0x50] sm:$0xff]
    %v65 = vld [vmem:[#allocation2 + $0x58] sm:$0xff]
    %v66 = vld [vmem:[#allocation2 + $0x60] sm:$0xff]
    %v67 = vld [vmem:[#allocation2 + $0x68] sm:$0xff]
    %v68 = vld [vmem:[#allocation2 + $0x70] sm:$0xff]
    %v69 = vld [vmem:[#allocation2 + $0x78] sm:$0xff]
    %v70 = vld [vmem:[#allocation2 + $0x80] sm:$0xff]
    %v71 = vld [vmem:[#allocation2 + $0x88] sm:$0xff]
    %v72 = vld [vmem:[#allocation2 + $0x90] sm:$0xff]
    %v73 = vld [vmem:[#allocation2 + $0x98] sm:$0xff]
    %v74 = vld [vmem:[#allocation2 + $0xa0] sm:$0xff]
    %v75 = vld [vmem:[#allocation2 + $0xa8] sm:$0xff]
    %v76 = vld [vmem:[#allocation2 + $0xb0] sm:$0xff]
    %v77 = vld [vmem:[#allocation2 + $0xb8] sm:$0xff]
    %v78 = vld [vmem:[#allocation2 + $0xc0] sm:$0xff]
    %v79 = vld [vmem:[#allocation2 + $0xc8] sm:$0xff]
    %v80 = vld [vmem:[#allocation2 + $0xd0] sm:$0xff]
    %v81 = vld [vmem:[#allocation2 + $0xd8] sm:$0xff]
    %v82 = vld [vmem:[#allocation2 + $0xe0] sm:$0xff]
    %v83 = vld [vmem:[#allocation2 + $0xe8] sm:$0xff]
    %v84 = vld [vmem:[#allocation2 + $0xf0] sm:$0xff]
    %v85 = vld [vmem:[#allocation2 + $0xf8] sm:$0xff]
    %v86 = vld [vmem:[#allocation2 + $0x100] sm:$0xff]
    %v87 = vld [vmem:[#allocation2 + $0x108] sm:$0xff]
    %v88 = vld [vmem:[#allocation2 + $0x110] sm:$0xff]
    %v89 = vld [vmem:[#allocation2 + $0x118] sm:$0xff]
    %v90 = vld [vmem:[#allocation2 + $0x120] sm:$0xff]
    %v91 = vld [vmem:[#allocation2 + $0x128] sm:$0xff]
    %v92 = vld [vmem:[#allocation2 + $0x130] sm:$0xff]
    %v93 = vld [vmem:[#allocation2 + $0x138] sm:$0xff]
    %v94 = vld [vmem:[#allocation2 + $0x140] sm:$0xff]
    %v95 = vld [vmem:[#allocation2 + $0x148] sm:$0xff]
    %v96 = vld [vmem:[#allocation2 + $0x150] sm:$0xff]
    %v97 = vld [vmem:[#allocation2 + $0x158] sm:$0xff]
    %v98 = vld [vmem:[#allocation2 + $0x160] sm:$0xff]
    %v99 = vld [vmem:[#allocation2 + $0x168] sm:$0xff]
    %v100 = vld [vmem:[#allocation2 + $0x170] sm:$0xff]
    %v101 = vld [vmem:[#allocation2 + $0x178] sm:$0xff]
    %v102 = vld [vmem:[#allocation2 + $0x180] sm:$0xff]
    %v103 = vld [vmem:[#allocation2 + $0x188] sm:$0xff]
    %v104 = vld [vmem:[#allocation2 + $0x190] sm:$0xff]
    %v105 = vld [vmem:[#allocation2 + $0x198] sm:$0xff]
    %v106 = vld [vmem:[#allocation2 + $0x1a0] sm:$0xff]
    %v107 = vld [vmem:[#allocation2 + $0x1a8] sm:$0xff]
    %v108 = vld [vmem:[#allocation2 + $0x1b0] sm:$0xff]
    %v109 = vld [vmem:[#allocation2 + $0x1b8] sm:$0xff]
    %v110 = vld [vmem:[#allocation2 + $0x1c0] sm:$0xff]
    %v111 = vld [vmem:[#allocation2 + $0x1c8] sm:$0xff]
    %v112 = vld [vmem:[#allocation2 + $0x1d0] sm:$0xff]
    %v113 = vld [vmem:[#allocation2 + $0x1d8] sm:$0xff]
    %v114 = vld [vmem:[#allocation2 + $0x1e0] sm:$0xff]
    %v115 = vld [vmem:[#allocation2 + $0x1e8] sm:$0xff]
    %v116 = vld [vmem:[#allocation2 + $0x1f0] sm:$0xff]
    %v117 = vld [vmem:[#allocation2 + $0x1f8] sm:$0xff]
    %v118 = vpack.c.bf16 %v56, %v54
    %v119 = vpack.c.bf16 %v57, %v55
    %v120 = vpack.c.bf16 %v60, %v58
    %v121 = vpack.c.bf16 %v61, %v59
    %v122 = vpack.c.bf16 %v64, %v62
    %v123 = vpack.c.bf16 %v65, %v63
    %v124 = vpack.c.bf16 %v68, %v66
    %v125 = vpack.c.bf16 %v69, %v67
    %v126 = vpack.c.bf16 %v72, %v70
    %v127 = vpack.c.bf16 %v73, %v71
    %v128 = vpack.c.bf16 %v76, %v74
    %v129 = vpack.c.bf16 %v77, %v75
    %v130 = vpack.c.bf16 %v80, %v78
    %v131 = vpack.c.bf16 %v81, %v79
    %v132 = vpack.c.bf16 %v84, %v82
    %v133 = vpack.c.bf16 %v85, %v83
    %v134 = vpack.c.bf16 %v88, %v86
    %v135 = vpack.c.bf16 %v89, %v87
    %v136 = vpack.c.bf16 %v92, %v90
    %v137 = vpack.c.bf16 %v93, %v91
    %v138 = vpack.c.bf16 %v96, %v94
    %v139 = vpack.c.bf16 %v97, %v95
    %v140 = vpack.c.bf16 %v100, %v98
    %v141 = vpack.c.bf16 %v101, %v99
    %v142 = vpack.c.bf16 %v104, %v102
    %v143 = vpack.c.bf16 %v105, %v103
    %v144 = vpack.c.bf16 %v108, %v106
    %v145 = vpack.c.bf16 %v109, %v107
    %v146 = vpack.c.bf16 %v112, %v110
    %v147 = vpack.c.bf16 %v113, %v111
    %v148 = vpack.c.bf16 %v116, %v114
    %v149 = vpack.c.bf16 %v117, %v115
    %v150 = vld [vmem:[#allocation5] sm:$0xff]
    %v151 = vld [vmem:[#allocation5 + $0x8] sm:$0xff]
    %v152 = vld [vmem:[#allocation5 + $0x10] sm:$0xff]
    %v153 = vld [vmem:[#allocation5 + $0x18] sm:$0xff]
    %v154 = vld [vmem:[#allocation5 + $0x20] sm:$0xff]
    %v155 = vld [vmem:[#allocation5 + $0x28] sm:$0xff]
    %v156 = vld [vmem:[#allocation5 + $0x30] sm:$0xff]
    %v157 = vld [vmem:[#allocation5 + $0x38] sm:$0xff]
    %v158 = vld [vmem:[#allocation5 + $0x40] sm:$0xff]
    %v159 = vld [vmem:[#allocation5 + $0x48] sm:$0xff]
    %v160 = vld [vmem:[#allocation5 + $0x50] sm:$0xff]
    %v161 = vld [vmem:[#allocation5 + $0x58] sm:$0xff]
    %v162 = vld [vmem:[#allocation5 + $0x60] sm:$0xff]
    %v163 = vld [vmem:[#allocation5 + $0x68] sm:$0xff]
    %v164 = vld [vmem:[#allocation5 + $0x70] sm:$0xff]
    %v165 = vld [vmem:[#allocation5 + $0x78] sm:$0xff]
    %v166 = vld [vmem:[#allocation5 + $0x80] sm:$0xff]
    %v167 = vld [vmem:[#allocation5 + $0x88] sm:$0xff]
    %v168 = vld [vmem:[#allocation5 + $0x90] sm:$0xff]
    %v169 = vld [vmem:[#allocation5 + $0x98] sm:$0xff]
    %v170 = vld [vmem:[#allocation5 + $0xa0] sm:$0xff]
    %v171 = vld [vmem:[#allocation5 + $0xa8] sm:$0xff]
    %v172 = vld [vmem:[#allocation5 + $0xb0] sm:$0xff]
    %v173 = vld [vmem:[#allocation5 + $0xb8] sm:$0xff]
    %v174 = vld [vmem:[#allocation5 + $0xc0] sm:$0xff]
    %v175 = vld [vmem:[#allocation5 + $0xc8] sm:$0xff]
    %v176 = vld [vmem:[#allocation5 + $0xd0] sm:$0xff]
    %v177 = vld [vmem:[#allocation5 + $0xd8] sm:$0xff]
    %v178 = vld [vmem:[#allocation5 + $0xe0] sm:$0xff]
    %v179 = vld [vmem:[#allocation5 + $0xe8] sm:$0xff]
    %v180 = vld [vmem:[#allocation5 + $0xf0] sm:$0xff]
    %v181 = vld [vmem:[#allocation5 + $0xf8] sm:$0xff]
    %v182 = vld [vmem:[#allocation5 + $0x100] sm:$0xff]
    %v183 = vld [vmem:[#allocation5 + $0x108] sm:$0xff]
    %v184 = vld [vmem:[#allocation5 + $0x110] sm:$0xff]
    %v185 = vld [vmem:[#allocation5 + $0x118] sm:$0xff]
    %v186 = vld [vmem:[#allocation5 + $0x120] sm:$0xff]
    %v187 = vld [vmem:[#allocation5 + $0x128] sm:$0xff]
    %v188 = vld [vmem:[#allocation5 + $0x130] sm:$0xff]
    %v189 = vld [vmem:[#allocation5 + $0x138] sm:$0xff]
    %v190 = vld [vmem:[#allocation5 + $0x140] sm:$0xff]
    %v191 = vld [vmem:[#allocation5 + $0x148] sm:$0xff]
    %v192 = vld [vmem:[#allocation5 + $0x150] sm:$0xff]
    %v193 = vld [vmem:[#allocation5 + $0x158] sm:$0xff]
    %v194 = vld [vmem:[#allocation5 + $0x160] sm:$0xff]
    %v195 = vld [vmem:[#allocation5 + $0x168] sm:$0xff]
    %v196 = vld [vmem:[#allocation5 + $0x170] sm:$0xff]
    %v197 = vld [vmem:[#allocation5 + $0x178] sm:$0xff]
    %v198 = vld [vmem:[#allocation5 + $0x180] sm:$0xff]
    %v199 = vld [vmem:[#allocation5 + $0x188] sm:$0xff]
    %v200 = vld [vmem:[#allocation5 + $0x190] sm:$0xff]
    %v201 = vld [vmem:[#allocation5 + $0x198] sm:$0xff]
    %v202 = vld [vmem:[#allocation5 + $0x1a0] sm:$0xff]
    %v203 = vld [vmem:[#allocation5 + $0x1a8] sm:$0xff]
    %v204 = vld [vmem:[#allocation5 + $0x1b0] sm:$0xff]
    %v205 = vld [vmem:[#allocation5 + $0x1b8] sm:$0xff]
    %v206 = vld [vmem:[#allocation5 + $0x1c0] sm:$0xff]
    %v207 = vld [vmem:[#allocation5 + $0x1c8] sm:$0xff]
    %v208 = vld [vmem:[#allocation5 + $0x1d0] sm:$0xff]
    %v209 = vld [vmem:[#allocation5 + $0x1d8] sm:$0xff]
    %v210 = vld [vmem:[#allocation5 + $0x1e0] sm:$0xff]
    %v211 = vld [vmem:[#allocation5 + $0x1e8] sm:$0xff]
    %v212 = vld [vmem:[#allocation5 + $0x1f0] sm:$0xff]
    %v213 = vld [vmem:[#allocation5 + $0x1f8] sm:$0xff]
    %v214 = vld [vmem:[#allocation5 + $0x200] sm:$0xff]
    %v215 = vld [vmem:[#allocation5 + $0x208] sm:$0xff]
    %v216 = vld [vmem:[#allocation5 + $0x210] sm:$0xff]
    %v217 = vld [vmem:[#allocation5 + $0x218] sm:$0xff]
    %v218 = vld [vmem:[#allocation5 + $0x220] sm:$0xff]
    %v219 = vld [vmem:[#allocation5 + $0x228] sm:$0xff]
    %v220 = vld [vmem:[#allocation5 + $0x230] sm:$0xff]
    %v221 = vld [vmem:[#allocation5 + $0x238] sm:$0xff]
    %v222 = vld [vmem:[#allocation5 + $0x240] sm:$0xff]
    %v223 = vld [vmem:[#allocation5 + $0x248] sm:$0xff]
    %v224 = vld [vmem:[#allocation5 + $0x250] sm:$0xff]
    %v225 = vld [vmem:[#allocation5 + $0x258] sm:$0xff]
    %v226 = vld [vmem:[#allocation5 + $0x260] sm:$0xff]
    %v227 = vld [vmem:[#allocation5 + $0x268] sm:$0xff]
    %v228 = vld [vmem:[#allocation5 + $0x270] sm:$0xff]
    %v229 = vld [vmem:[#allocation5 + $0x278] sm:$0xff]
    %v230 = vld [vmem:[#allocation5 + $0x280] sm:$0xff]
    %v231 = vld [vmem:[#allocation5 + $0x288] sm:$0xff]
    %v232 = vld [vmem:[#allocation5 + $0x290] sm:$0xff]
    %v233 = vld [vmem:[#allocation5 + $0x298] sm:$0xff]
    %v234 = vld [vmem:[#allocation5 + $0x2a0] sm:$0xff]
    %v235 = vld [vmem:[#allocation5 + $0x2a8] sm:$0xff]
    %v236 = vld [vmem:[#allocation5 + $0x2b0] sm:$0xff]
    %v237 = vld [vmem:[#allocation5 + $0x2b8] sm:$0xff]
    %v238 = vld [vmem:[#allocation5 + $0x2c0] sm:$0xff]
    %v239 = vld [vmem:[#allocation5 + $0x2c8] sm:$0xff]
    %v240 = vld [vmem:[#allocation5 + $0x2d0] sm:$0xff]
    %v241 = vld [vmem:[#allocation5 + $0x2d8] sm:$0xff]
    %v242 = vld [vmem:[#allocation5 + $0x2e0] sm:$0xff]
    %v243 = vld [vmem:[#allocation5 + $0x2e8] sm:$0xff]
    %v244 = vld [vmem:[#allocation5 + $0x2f0] sm:$0xff]
    %v245 = vld [vmem:[#allocation5 + $0x2f8] sm:$0xff]
    %v246 = vld [vmem:[#allocation7] sm:$0x3f]
    %v248 = vlaneseq
    %v249 = vshrl.u32 %v248, 7
    %v250 = vsub.s32 0, %v249
    %v251 = vrot.slane %v246, %v250
    %v252 = vlaneseq
    %v253 = vshrl.u32 %v252, 7
    %v254 = vsub.s32 1, %v253
    %v255 = vrot.slane %v246, %v254
    %v256 = vlaneseq
    %v257 = vshrl.u32 %v256, 7
    %v258 = vsub.s32 2, %v257
    %v259 = vrot.slane %v246, %v258
    %v260 = vlaneseq
    %v261 = vshrl.u32 %v260, 7
    %v262 = vsub.s32 3, %v261
    %v263 = vrot.slane %v246, %v262
    %v264 = vlaneseq
    %v265 = vshrl.u32 %v264, 7
    %v266 = vsub.s32 4, %v265
    %v267 = vrot.slane %v246, %v266
    %v268 = vlaneseq
    %v269 = vshrl.u32 %v268, 7
    %v270 = vsub.s32 5, %v269
    %v271 = vrot.slane %v246, %v270
    %v374 = vunpack.c.l.b16 %v150
    %v375 = vunpack.c.h.b16 %v150
    %v376 = vunpack.c.l.b16 %v151
    %v377 = vunpack.c.h.b16 %v151
    %v378 = vunpack.c.l.b16 %v152
    %v379 = vunpack.c.h.b16 %v152
    %v380 = vunpack.c.l.b16 %v153
    %v381 = vunpack.c.h.b16 %v153
    %v382 = vunpack.c.l.b16 %v154
    %v383 = vunpack.c.h.b16 %v154
    %v384 = vunpack.c.l.b16 %v155
    %v385 = vunpack.c.h.b16 %v155
    %v386 = vunpack.c.l.b16 %v156
    %v387 = vunpack.c.h.b16 %v156
    %v388 = vunpack.c.l.b16 %v157
    %v389 = vunpack.c.h.b16 %v157
    %v390 = vunpack.c.l.b16 %v158
    %v391 = vunpack.c.h.b16 %v158
    %v392 = vunpack.c.l.b16 %v159
    %v393 = vunpack.c.h.b16 %v159
    %v394 = vunpack.c.l.b16 %v160
    %v395 = vunpack.c.h.b16 %v160
    %v396 = vunpack.c.l.b16 %v161
    %v397 = vunpack.c.h.b16 %v161
    %v398 = vunpack.c.l.b16 %v162
    %v399 = vunpack.c.h.b16 %v162
    %v400 = vunpack.c.l.b16 %v163
    %v401 = vunpack.c.h.b16 %v163
    %v402 = vunpack.c.l.b16 %v164
    %v403 = vunpack.c.h.b16 %v164
    %v404 = vunpack.c.l.b16 %v165
    %v405 = vunpack.c.h.b16 %v165
    %v406 = vunpack.c.l.b16 %v166
    %v407 = vunpack.c.h.b16 %v166
    %v408 = vunpack.c.l.b16 %v167
    %v409 = vunpack.c.h.b16 %v167
    %v410 = vunpack.c.l.b16 %v168
    %v411 = vunpack.c.h.b16 %v168
    %v412 = vunpack.c.l.b16 %v169
    %v413 = vunpack.c.h.b16 %v169
    %v414 = vunpack.c.l.b16 %v170
    %v415 = vunpack.c.h.b16 %v170
    %v416 = vunpack.c.l.b16 %v171
    %v417 = vunpack.c.h.b16 %v171
    %v418 = vunpack.c.l.b16 %v172
    %v419 = vunpack.c.h.b16 %v172
    %v420 = vunpack.c.l.b16 %v173
    %v421 = vunpack.c.h.b16 %v173
    %v422 = vunpack.c.l.b16 %v174
    %v423 = vunpack.c.h.b16 %v174
    %v424 = vunpack.c.l.b16 %v175
    %v425 = vunpack.c.h.b16 %v175
    %v426 = vunpack.c.l.b16 %v176
    %v427 = vunpack.c.h.b16 %v176
    %v428 = vunpack.c.l.b16 %v177
    %v429 = vunpack.c.h.b16 %v177
    %v430 = vunpack.c.l.b16 %v178
    %v431 = vunpack.c.h.b16 %v178
    %v432 = vunpack.c.l.b16 %v179
    %v433 = vunpack.c.h.b16 %v179
    %v434 = vunpack.c.l.b16 %v180
    %v435 = vunpack.c.h.b16 %v180
    %v436 = vunpack.c.l.b16 %v181
    %v437 = vunpack.c.h.b16 %v181
    %v438 = vunpack.c.l.b16 %v182
    %v439 = vunpack.c.h.b16 %v182
    %v440 = vunpack.c.l.b16 %v183
    %v441 = vunpack.c.h.b16 %v183
    %v442 = vunpack.c.l.b16 %v184
    %v443 = vunpack.c.h.b16 %v184
    %v444 = vunpack.c.l.b16 %v185
    %v445 = vunpack.c.h.b16 %v185
    %v446 = vunpack.c.l.b16 %v186
    %v447 = vunpack.c.h.b16 %v186
    %v448 = vunpack.c.l.b16 %v187
    %v449 = vunpack.c.h.b16 %v187
    %v450 = vunpack.c.l.b16 %v188
    %v451 = vunpack.c.h.b16 %v188
    %v452 = vunpack.c.l.b16 %v189
    %v453 = vunpack.c.h.b16 %v189
    %v454 = vunpack.c.l.b16 %v190
    %v455 = vunpack.c.h.b16 %v190
    %v456 = vunpack.c.l.b16 %v191
    %v457 = vunpack.c.h.b16 %v191
    %v458 = vunpack.c.l.b16 %v192
    %v459 = vunpack.c.h.b16 %v192
    %v460 = vunpack.c.l.b16 %v193
    %v461 = vunpack.c.h.b16 %v193
    %v462 = vunpack.c.l.b16 %v194
    %v463 = vunpack.c.h.b16 %v194
    %v464 = vunpack.c.l.b16 %v195
    %v465 = vunpack.c.h.b16 %v195
    %v466 = vunpack.c.l.b16 %v196
    %v467 = vunpack.c.h.b16 %v196
    %v468 = vunpack.c.l.b16 %v197
    %v469 = vunpack.c.h.b16 %v197
    %v470 = vunpack.c.l.b16 %v198
    %v471 = vunpack.c.h.b16 %v198
    %v472 = vunpack.c.l.b16 %v199
    %v473 = vunpack.c.h.b16 %v199
    %v474 = vunpack.c.l.b16 %v200
    %v475 = vunpack.c.h.b16 %v200
    %v476 = vunpack.c.l.b16 %v201
    %v477 = vunpack.c.h.b16 %v201
    %v478 = vunpack.c.l.b16 %v202
    %v479 = vunpack.c.h.b16 %v202
    %v480 = vunpack.c.l.b16 %v203
    %v481 = vunpack.c.h.b16 %v203
    %v482 = vunpack.c.l.b16 %v204
    %v483 = vunpack.c.h.b16 %v204
    %v484 = vunpack.c.l.b16 %v205
    %v485 = vunpack.c.h.b16 %v205
    %v486 = vunpack.c.l.b16 %v206
    %v487 = vunpack.c.h.b16 %v206
    %v488 = vunpack.c.l.b16 %v207
    %v489 = vunpack.c.h.b16 %v207
    %v490 = vunpack.c.l.b16 %v208
    %v491 = vunpack.c.h.b16 %v208
    %v492 = vunpack.c.l.b16 %v209
    %v493 = vunpack.c.h.b16 %v209
    %v494 = vunpack.c.l.b16 %v210
    %v495 = vunpack.c.h.b16 %v210
    %v496 = vunpack.c.l.b16 %v211
    %v497 = vunpack.c.h.b16 %v211
    %v498 = vunpack.c.l.b16 %v212
    %v499 = vunpack.c.h.b16 %v212
    %v500 = vunpack.c.l.b16 %v213
    %v501 = vunpack.c.h.b16 %v213
    %v502 = vunpack.c.l.b16 %v214
    %v503 = vunpack.c.h.b16 %v214
    %v504 = vunpack.c.l.b16 %v215
    %v505 = vunpack.c.h.b16 %v215
    %v506 = vunpack.c.l.b16 %v216
    %v507 = vunpack.c.h.b16 %v216
    %v508 = vunpack.c.l.b16 %v217
    %v509 = vunpack.c.h.b16 %v217
    %v510 = vunpack.c.l.b16 %v218
    %v511 = vunpack.c.h.b16 %v218
    %v512 = vunpack.c.l.b16 %v219
    %v513 = vunpack.c.h.b16 %v219
    %v514 = vunpack.c.l.b16 %v220
    %v515 = vunpack.c.h.b16 %v220
    %v516 = vunpack.c.l.b16 %v221
    %v517 = vunpack.c.h.b16 %v221
    %v518 = vunpack.c.l.b16 %v222
    %v519 = vunpack.c.h.b16 %v222
    %v520 = vunpack.c.l.b16 %v223
    %v521 = vunpack.c.h.b16 %v223
    %v522 = vunpack.c.l.b16 %v224
    %v523 = vunpack.c.h.b16 %v224
    %v524 = vunpack.c.l.b16 %v225
    %v525 = vunpack.c.h.b16 %v225
    %v526 = vunpack.c.l.b16 %v226
    %v527 = vunpack.c.h.b16 %v226
    %v528 = vunpack.c.l.b16 %v227
    %v529 = vunpack.c.h.b16 %v227
    %v530 = vunpack.c.l.b16 %v228
    %v531 = vunpack.c.h.b16 %v228
    %v532 = vunpack.c.l.b16 %v229
    %v533 = vunpack.c.h.b16 %v229
    %v534 = vunpack.c.l.b16 %v230
    %v535 = vunpack.c.h.b16 %v230
    %v536 = vunpack.c.l.b16 %v231
    %v537 = vunpack.c.h.b16 %v231
    %v538 = vunpack.c.l.b16 %v232
    %v539 = vunpack.c.h.b16 %v232
    %v540 = vunpack.c.l.b16 %v233
    %v541 = vunpack.c.h.b16 %v233
    %v542 = vunpack.c.l.b16 %v234
    %v543 = vunpack.c.h.b16 %v234
    %v544 = vunpack.c.l.b16 %v235
    %v545 = vunpack.c.h.b16 %v235
    %v546 = vunpack.c.l.b16 %v236
    %v547 = vunpack.c.h.b16 %v236
    %v548 = vunpack.c.l.b16 %v237
    %v549 = vunpack.c.h.b16 %v237
    %v550 = vunpack.c.l.b16 %v238
    %v551 = vunpack.c.h.b16 %v238
    %v552 = vunpack.c.l.b16 %v239
    %v553 = vunpack.c.h.b16 %v239
    %v554 = vunpack.c.l.b16 %v240
    %v555 = vunpack.c.h.b16 %v240
    %v556 = vunpack.c.l.b16 %v241
    %v557 = vunpack.c.h.b16 %v241
    %v558 = vunpack.c.l.b16 %v242
    %v559 = vunpack.c.h.b16 %v242
    %v560 = vunpack.c.l.b16 %v243
    %v561 = vunpack.c.h.b16 %v243
    %v562 = vunpack.c.l.b16 %v244
    %v563 = vunpack.c.h.b16 %v244
    %v564 = vunpack.c.l.b16 %v245
    %v565 = vunpack.c.h.b16 %v245
    %v566 = vpack.c.b16 %v380, %v374
    %v567 = vpack.c.b16 %v381, %v375
    %v568 = vpack.c.b16 %v382, %v376
    %v569 = vpack.c.b16 %v383, %v377
    %v570 = vpack.c.b16 %v384, %v378
    %v571 = vpack.c.b16 %v385, %v379
    %v572 = vpack.c.b16 %v392, %v386
    %v573 = vpack.c.b16 %v393, %v387
    %v574 = vpack.c.b16 %v394, %v388
    %v575 = vpack.c.b16 %v395, %v389
    %v576 = vpack.c.b16 %v396, %v390
    %v577 = vpack.c.b16 %v397, %v391
    %v578 = vpack.c.b16 %v404, %v398
    %v579 = vpack.c.b16 %v405, %v399
    %v580 = vpack.c.b16 %v406, %v400
    %v581 = vpack.c.b16 %v407, %v401
    %v582 = vpack.c.b16 %v408, %v402
    %v583 = vpack.c.b16 %v409, %v403
    %v584 = vpack.c.b16 %v416, %v410
    %v585 = vpack.c.b16 %v417, %v411
    %v586 = vpack.c.b16 %v418, %v412
    %v587 = vpack.c.b16 %v419, %v413
    %v588 = vpack.c.b16 %v420, %v414
    %v589 = vpack.c.b16 %v421, %v415
    %v590 = vpack.c.b16 %v428, %v422
    %v591 = vpack.c.b16 %v429, %v423
    %v592 = vpack.c.b16 %v430, %v424
    %v593 = vpack.c.b16 %v431, %v425
    %v594 = vpack.c.b16 %v432, %v426
    %v595 = vpack.c.b16 %v433, %v427
    %v596 = vpack.c.b16 %v440, %v434
    %v597 = vpack.c.b16 %v441, %v435
    %v598 = vpack.c.b16 %v442, %v436
    %v599 = vpack.c.b16 %v443, %v437
    %v600 = vpack.c.b16 %v444, %v438
    %v601 = vpack.c.b16 %v445, %v439
    %v602 = vpack.c.b16 %v452, %v446
    %v603 = vpack.c.b16 %v453, %v447
    %v604 = vpack.c.b16 %v454, %v448
    %v605 = vpack.c.b16 %v455, %v449
    %v606 = vpack.c.b16 %v456, %v450
    %v607 = vpack.c.b16 %v457, %v451
    %v608 = vpack.c.b16 %v464, %v458
    %v609 = vpack.c.b16 %v465, %v459
    %v610 = vpack.c.b16 %v466, %v460
    %v611 = vpack.c.b16 %v467, %v461
    %v612 = vpack.c.b16 %v468, %v462
    %v613 = vpack.c.b16 %v469, %v463
    %v614 = vpack.c.b16 %v476, %v470
    %v615 = vpack.c.b16 %v477, %v471
    %v616 = vpack.c.b16 %v478, %v472
    %v617 = vpack.c.b16 %v479, %v473
    %v618 = vpack.c.b16 %v480, %v474
    %v619 = vpack.c.b16 %v481, %v475
    %v620 = vpack.c.b16 %v488, %v482
    %v621 = vpack.c.b16 %v489, %v483
    %v622 = vpack.c.b16 %v490, %v484
    %v623 = vpack.c.b16 %v491, %v485
    %v624 = vpack.c.b16 %v492, %v486
    %v625 = vpack.c.b16 %v493, %v487
    %v626 = vpack.c.b16 %v500, %v494
    %v627 = vpack.c.b16 %v501, %v495
    %v628 = vpack.c.b16 %v502, %v496
    %v629 = vpack.c.b16 %v503, %v497
    %v630 = vpack.c.b16 %v504, %v498
    %v631 = vpack.c.b16 %v505, %v499
    %v632 = vpack.c.b16 %v512, %v506
    %v633 = vpack.c.b16 %v513, %v507
    %v634 = vpack.c.b16 %v514, %v508
    %v635 = vpack.c.b16 %v515, %v509
    %v636 = vpack.c.b16 %v516, %v510
    %v637 = vpack.c.b16 %v517, %v511
    %v638 = vpack.c.b16 %v524, %v518
    %v639 = vpack.c.b16 %v525, %v519
    %v640 = vpack.c.b16 %v526, %v520
    %v641 = vpack.c.b16 %v527, %v521
    %v642 = vpack.c.b16 %v528, %v522
    %v643 = vpack.c.b16 %v529, %v523
    %v644 = vpack.c.b16 %v536, %v530
    %v645 = vpack.c.b16 %v537, %v531
    %v646 = vpack.c.b16 %v538, %v532
    %v647 = vpack.c.b16 %v539, %v533
    %v648 = vpack.c.b16 %v540, %v534
    %v649 = vpack.c.b16 %v541, %v535
    %v650 = vpack.c.b16 %v548, %v542
    %v651 = vpack.c.b16 %v549, %v543
    %v652 = vpack.c.b16 %v550, %v544
    %v653 = vpack.c.b16 %v551, %v545
    %v654 = vpack.c.b16 %v552, %v546
    %v655 = vpack.c.b16 %v553, %v547
    %v656 = vpack.c.b16 %v560, %v554
    %v657 = vpack.c.b16 %v561, %v555
    %v658 = vpack.c.b16 %v562, %v556
    %v659 = vpack.c.b16 %v563, %v557
    %v660 = vpack.c.b16 %v564, %v558
    %v661 = vpack.c.b16 %v565, %v559
    %758 = vmatprep.subr.bf16.mxu0 %v609
    %759 = vmatpush1.bf16.msra.mxu0 %v608
    %760 = vmatprep.subr.bf16.mxu0 %v603
    %761 = vmatpush1.bf16.msra.mxu0 %v602
    %762 = vmatprep.subr.bf16.mxu0 %v597
    %763 = vmatpush1.bf16.msra.mxu0 %v596
    %764 = vmatprep.subr.bf16.mxu0 %v591
    %765 = vmatpush1.bf16.msra.mxu0 %v590
    %766 = vmatprep.subr.bf16.mxu0 %v585
    %767 = vmatpush1.bf16.msra.mxu0 %v584
    %768 = vmatprep.subr.bf16.mxu0 %v579
    %769 = vmatpush1.bf16.msra.mxu0 %v578
    %770 = vmatprep.subr.bf16.mxu0 %v573
    %771 = vmatpush1.bf16.msra.mxu0 %v572
    %772 = vmatprep.subr.bf16.mxu0 %v567
    %773 = vmatpush1.bf16.msra.mxu0 %v566
    %774 = vmatprep.subr.bf16.mxu0 %v657
    %775 = vmatpush2.bf16.msra.mxu0 %v656
    %776 = vmatprep.subr.bf16.mxu0 %v651
    %777 = vmatpush2.bf16.msra.mxu0 %v650
    %778 = vmatprep.subr.bf16.mxu0 %v645
    %779 = vmatpush2.bf16.msra.mxu0 %v644
    %780 = vmatprep.subr.bf16.mxu0 %v639
    %781 = vmatpush2.bf16.msra.mxu0 %v638
    %782 = vmatprep.subr.bf16.mxu0 %v633
    %783 = vmatpush2.bf16.msra.mxu0 %v632
    %784 = vmatprep.subr.bf16.mxu0 %v627
    %785 = vmatpush2.bf16.msra.mxu0 %v626
    %786 = vmatprep.subr.bf16.mxu0 %v621
    %787 = vmatpush2.bf16.msra.mxu0 %v620
    %788 = vmatprep.subr.bf16.mxu0 %v615
    %789 = vmatpush2.bf16.msra.mxu0 %v614
    %790 = vmatprep.mubr.bf16.mxu0 %v119
    %791 = vmatmul.mubr.bf16.gmra.mxu0 %v118
    %v792 = vpop.f32.mrf.mxu0
    %v793 = vadd.f32 %v251, %v792
    %v794 = vpop.f32.mrf.mxu0
    %v795 = vadd.f32 %v255, %v794
    %v796 = vpop.f32.mrf.mxu0
    %v797 = vadd.f32 %v251, %v796
    %v798 = vpop.f32.mrf.mxu0
    %v799 = vadd.f32 %v255, %v798
    %800 = vmatprep.mubr.bf16.mxu0 %v121
    %801 = vmatmul.mubr.bf16.gmra.mxu0 %v120
    %v802 = vpop.f32.mrf.mxu0
    %v803 = vadd.f32 %v251, %v802
    %v804 = vpop.f32.mrf.mxu0
    %v805 = vadd.f32 %v255, %v804
    %v806 = vpop.f32.mrf.mxu0
    %v807 = vadd.f32 %v251, %v806
    %v808 = vpop.f32.mrf.mxu0
    %v809 = vadd.f32 %v255, %v808
    %810 = vmatprep.mubr.bf16.mxu0 %v123
    %811 = vmatmul.mubr.bf16.gmra.mxu0 %v122
    %v812 = vpop.f32.mrf.mxu0
    %v813 = vadd.f32 %v251, %v812
    %v814 = vpop.f32.mrf.mxu0
    %v815 = vadd.f32 %v255, %v814
    %v816 = vpop.f32.mrf.mxu0
    %v817 = vadd.f32 %v251, %v816
    %v818 = vpop.f32.mrf.mxu0
    %v819 = vadd.f32 %v255, %v818
    %820 = vmatprep.mubr.bf16.mxu0 %v125
    %821 = vmatmul.mubr.bf16.gmra.mxu0 %v124
    %v822 = vpop.f32.mrf.mxu0
    %v823 = vadd.f32 %v251, %v822
    %v824 = vpop.f32.mrf.mxu0
    %v825 = vadd.f32 %v255, %v824
    %v826 = vpop.f32.mrf.mxu0
    %v827 = vadd.f32 %v251, %v826
    %v828 = vpop.f32.mrf.mxu0
    %v829 = vadd.f32 %v255, %v828
    %830 = vmatprep.mubr.bf16.mxu0 %v127
    %831 = vmatmul.mubr.bf16.gmra.mxu0 %v126
    %v832 = vpop.f32.mrf.mxu0
    %v833 = vadd.f32 %v251, %v832
    %v834 = vpop.f32.mrf.mxu0
    %v835 = vadd.f32 %v255, %v834
    %v836 = vpop.f32.mrf.mxu0
    %v837 = vadd.f32 %v251, %v836
    %v838 = vpop.f32.mrf.mxu0
    %v839 = vadd.f32 %v255, %v838
    %840 = vmatprep.mubr.bf16.mxu0 %v129
    %841 = vmatmul.mubr.bf16.gmra.mxu0 %v128
    %v842 = vpop.f32.mrf.mxu0
    %v843 = vadd.f32 %v251, %v842
    %v844 = vpop.f32.mrf.mxu0
    %v845 = vadd.f32 %v255, %v844
    %v846 = vpop.f32.mrf.mxu0
    %v847 = vadd.f32 %v251, %v846
    %v848 = vpop.f32.mrf.mxu0
    %v849 = vadd.f32 %v255, %v848
    %850 = vmatprep.mubr.bf16.mxu0 %v131
    %851 = vmatmul.mubr.bf16.gmra.mxu0 %v130
    %v852 = vpop.f32.mrf.mxu0
    %v853 = vadd.f32 %v251, %v852
    %v854 = vpop.f32.mrf.mxu0
    %v855 = vadd.f32 %v255, %v854
    %v856 = vpop.f32.mrf.mxu0
    %v857 = vadd.f32 %v251, %v856
    %v858 = vpop.f32.mrf.mxu0
    %v859 = vadd.f32 %v255, %v858
    %860 = vmatprep.mubr.bf16.mxu0 %v133
    %861 = vmatmul.mubr.bf16.gmra.mxu0 %v132
    %v862 = vpop.f32.mrf.mxu0
    %v863 = vadd.f32 %v251, %v862
    %v864 = vpop.f32.mrf.mxu0
    %v865 = vadd.f32 %v255, %v864
    %v866 = vpop.f32.mrf.mxu0
    %v867 = vadd.f32 %v251, %v866
    %v868 = vpop.f32.mrf.mxu0
    %v869 = vadd.f32 %v255, %v868
    %870 = vmatprep.mubr.bf16.mxu0 %v135
    %871 = vmatmul.mubr.bf16.gmra.mxu0 %v134
    %v872 = vpop.f32.mrf.mxu0
    %v873 = vadd.f32 %v251, %v872
    %v874 = vpop.f32.mrf.mxu0
    %v875 = vadd.f32 %v255, %v874
    %v876 = vpop.f32.mrf.mxu0
    %v877 = vadd.f32 %v251, %v876
    %v878 = vpop.f32.mrf.mxu0
    %v879 = vadd.f32 %v255, %v878
    %880 = vmatprep.mubr.bf16.mxu0 %v137
    %881 = vmatmul.mubr.bf16.gmra.mxu0 %v136
    %v882 = vpop.f32.mrf.mxu0
    %v883 = vadd.f32 %v251, %v882
    %v884 = vpop.f32.mrf.mxu0
    %v885 = vadd.f32 %v255, %v884
    %v886 = vpop.f32.mrf.mxu0
    %v887 = vadd.f32 %v251, %v886
    %v888 = vpop.f32.mrf.mxu0
    %v889 = vadd.f32 %v255, %v888
    %890 = vmatprep.mubr.bf16.mxu0 %v139
    %891 = vmatmul.mubr.bf16.gmra.mxu0 %v138
    %v892 = vpop.f32.mrf.mxu0
    %v893 = vadd.f32 %v251, %v892
    %v894 = vpop.f32.mrf.mxu0
    %v895 = vadd.f32 %v255, %v894
    %v896 = vpop.f32.mrf.mxu0
    %v897 = vadd.f32 %v251, %v896
    %v898 = vpop.f32.mrf.mxu0
    %v899 = vadd.f32 %v255, %v898
    %900 = vmatprep.mubr.bf16.mxu0 %v141
    %901 = vmatmul.mubr.bf16.gmra.mxu0 %v140
    %v902 = vpop.f32.mrf.mxu0
    %v903 = vadd.f32 %v251, %v902
    %v904 = vpop.f32.mrf.mxu0
    %v905 = vadd.f32 %v255, %v904
    %v906 = vpop.f32.mrf.mxu0
    %v907 = vadd.f32 %v251, %v906
    %v908 = vpop.f32.mrf.mxu0
    %v909 = vadd.f32 %v255, %v908
    %910 = vmatprep.mubr.bf16.mxu0 %v143
    %911 = vmatmul.mubr.bf16.gmra.mxu0 %v142
    %v912 = vpop.f32.mrf.mxu0
    %v913 = vadd.f32 %v251, %v912
    %v914 = vpop.f32.mrf.mxu0
    %v915 = vadd.f32 %v255, %v914
    %v916 = vpop.f32.mrf.mxu0
    %v917 = vadd.f32 %v251, %v916
    %v918 = vpop.f32.mrf.mxu0
    %v919 = vadd.f32 %v255, %v918
    %920 = vmatprep.mubr.bf16.mxu0 %v145
    %921 = vmatmul.mubr.bf16.gmra.mxu0 %v144
    %v922 = vpop.f32.mrf.mxu0
    %v923 = vadd.f32 %v251, %v922
    %v924 = vpop.f32.mrf.mxu0
    %v925 = vadd.f32 %v255, %v924
    %v926 = vpop.f32.mrf.mxu0
    %v927 = vadd.f32 %v251, %v926
    %v928 = vpop.f32.mrf.mxu0
    %v929 = vadd.f32 %v255, %v928
    %930 = vmatprep.mubr.bf16.mxu0 %v147
    %931 = vmatmul.mubr.bf16.gmra.mxu0 %v146
    %v932 = vpop.f32.mrf.mxu0
    %v933 = vadd.f32 %v251, %v932
    %v934 = vpop.f32.mrf.mxu0
    %v935 = vadd.f32 %v255, %v934
    %v936 = vpop.f32.mrf.mxu0
    %v937 = vadd.f32 %v251, %v936
    %v938 = vpop.f32.mrf.mxu0
    %v939 = vadd.f32 %v255, %v938
    %940 = vmatprep.mubr.bf16.mxu0 %v149
    %941 = vmatmul.mubr.bf16.gmra.mxu0 %v148
    %v942 = vpop.f32.mrf.mxu0
    %v943 = vadd.f32 %v251, %v942
    %v944 = vpop.f32.mrf.mxu0
    %v945 = vadd.f32 %v255, %v944
    %v946 = vpop.f32.mrf.mxu0
    %v947 = vadd.f32 %v251, %v946
    %v948 = vpop.f32.mrf.mxu0
    %v949 = vadd.f32 %v255, %v948
    %950 = vdwg.mxu0
    %951 = vmatprep.subr.bf16.mxu0 %v611
    %952 = vmatpush1.bf16.msra.mxu0 %v610
    %953 = vmatprep.subr.bf16.mxu0 %v605
    %954 = vmatpush1.bf16.msra.mxu0 %v604
    %955 = vmatprep.subr.bf16.mxu0 %v599
    %956 = vmatpush1.bf16.msra.mxu0 %v598
    %957 = vmatprep.subr.bf16.mxu0 %v593
    %958 = vmatpush1.bf16.msra.mxu0 %v592
    %959 = vmatprep.subr.bf16.mxu0 %v587
    %960 = vmatpush1.bf16.msra.mxu0 %v586
    %961 = vmatprep.subr.bf16.mxu0 %v581
    %962 = vmatpush1.bf16.msra.mxu0 %v580
    %963 = vmatprep.subr.bf16.mxu0 %v575
    %964 = vmatpush1.bf16.msra.mxu0 %v574
    %965 = vmatprep.subr.bf16.mxu0 %v569
    %966 = vmatpush1.bf16.msra.mxu0 %v568
    %967 = vmatprep.subr.bf16.mxu0 %v659
    %968 = vmatpush2.bf16.msra.mxu0 %v658
    %969 = vmatprep.subr.bf16.mxu0 %v653
    %970 = vmatpush2.bf16.msra.mxu0 %v652
    %971 = vmatprep.subr.bf16.mxu0 %v647
    %972 = vmatpush2.bf16.msra.mxu0 %v646
    %973 = vmatprep.subr.bf16.mxu0 %v641
    %974 = vmatpush2.bf16.msra.mxu0 %v640
    %975 = vmatprep.subr.bf16.mxu0 %v635
    %976 = vmatpush2.bf16.msra.mxu0 %v634
    %977 = vmatprep.subr.bf16.mxu0 %v629
    %978 = vmatpush2.bf16.msra.mxu0 %v628
    %979 = vmatprep.subr.bf16.mxu0 %v623
    %980 = vmatpush2.bf16.msra.mxu0 %v622
    %981 = vmatprep.subr.bf16.mxu0 %v617
    %982 = vmatpush2.bf16.msra.mxu0 %v616
    %983 = vmatprep.mubr.bf16.mxu0 %v119
    %984 = vmatmul.mubr.bf16.gmra.mxu0 %v118
    %v985 = vpop.f32.mrf.mxu0
    %v986 = vadd.f32 %v259, %v985
    %v987 = vpop.f32.mrf.mxu0
    %v988 = vadd.f32 %v263, %v987
    %v989 = vpop.f32.mrf.mxu0
    %v990 = vadd.f32 %v259, %v989
    %v991 = vpop.f32.mrf.mxu0
    %v992 = vadd.f32 %v263, %v991
    %993 = vmatprep.mubr.bf16.mxu0 %v121
    %994 = vmatmul.mubr.bf16.gmra.mxu0 %v120
    %v995 = vpop.f32.mrf.mxu0
    %v996 = vadd.f32 %v259, %v995
    %v997 = vpop.f32.mrf.mxu0
    %v998 = vadd.f32 %v263, %v997
    %v999 = vpop.f32.mrf.mxu0
    %v1000 = vadd.f32 %v259, %v999
    %v1001 = vpop.f32.mrf.mxu0
    %v1002 = vadd.f32 %v263, %v1001
    %1003 = vmatprep.mubr.bf16.mxu0 %v123
    %1004 = vmatmul.mubr.bf16.gmra.mxu0 %v122
    %v1005 = vpop.f32.mrf.mxu0
    %v1006 = vadd.f32 %v259, %v1005
    %v1007 = vpop.f32.mrf.mxu0
    %v1008 = vadd.f32 %v263, %v1007
    %v1009 = vpop.f32.mrf.mxu0
    %v1010 = vadd.f32 %v259, %v1009
    %v1011 = vpop.f32.mrf.mxu0
    %v1012 = vadd.f32 %v263, %v1011
    %1013 = vmatprep.mubr.bf16.mxu0 %v125
    %1014 = vmatmul.mubr.bf16.gmra.mxu0 %v124
    %v1015 = vpop.f32.mrf.mxu0
    %v1016 = vadd.f32 %v259, %v1015
    %v1017 = vpop.f32.mrf.mxu0
    %v1018 = vadd.f32 %v263, %v1017
    %v1019 = vpop.f32.mrf.mxu0
    %v1020 = vadd.f32 %v259, %v1019
    %v1021 = vpop.f32.mrf.mxu0
    %v1022 = vadd.f32 %v263, %v1021
    %1023 = vmatprep.mubr.bf16.mxu0 %v127
    %1024 = vmatmul.mubr.bf16.gmra.mxu0 %v126
    %v1025 = vpop.f32.mrf.mxu0
    %v1026 = vadd.f32 %v259, %v1025
    %v1027 = vpop.f32.mrf.mxu0
    %v1028 = vadd.f32 %v263, %v1027
    %v1029 = vpop.f32.mrf.mxu0
    %v1030 = vadd.f32 %v259, %v1029
    %v1031 = vpop.f32.mrf.mxu0
    %v1032 = vadd.f32 %v263, %v1031
    %1033 = vmatprep.mubr.bf16.mxu0 %v129
    %1034 = vmatmul.mubr.bf16.gmra.mxu0 %v128
    %v1035 = vpop.f32.mrf.mxu0
    %v1036 = vadd.f32 %v259, %v1035
    %v1037 = vpop.f32.mrf.mxu0
    %v1038 = vadd.f32 %v263, %v1037
    %v1039 = vpop.f32.mrf.mxu0
    %v1040 = vadd.f32 %v259, %v1039
    %v1041 = vpop.f32.mrf.mxu0
    %v1042 = vadd.f32 %v263, %v1041
    %1043 = vmatprep.mubr.bf16.mxu0 %v131
    %1044 = vmatmul.mubr.bf16.gmra.mxu0 %v130
    %v1045 = vpop.f32.mrf.mxu0
    %v1046 = vadd.f32 %v259, %v1045
    %v1047 = vpop.f32.mrf.mxu0
    %v1048 = vadd.f32 %v263, %v1047
    %v1049 = vpop.f32.mrf.mxu0
    %v1050 = vadd.f32 %v259, %v1049
    %v1051 = vpop.f32.mrf.mxu0
    %v1052 = vadd.f32 %v263, %v1051
    %1053 = vmatprep.mubr.bf16.mxu0 %v133
    %1054 = vmatmul.mubr.bf16.gmra.mxu0 %v132
    %v1055 = vpop.f32.mrf.mxu0
    %v1056 = vadd.f32 %v259, %v1055
    %v1057 = vpop.f32.mrf.mxu0
    %v1058 = vadd.f32 %v263, %v1057
    %v1059 = vpop.f32.mrf.mxu0
    %v1060 = vadd.f32 %v259, %v1059
    %v1061 = vpop.f32.mrf.mxu0
    %v1062 = vadd.f32 %v263, %v1061
    %1063 = vmatprep.mubr.bf16.mxu0 %v135
    %1064 = vmatmul.mubr.bf16.gmra.mxu0 %v134
    %v1065 = vpop.f32.mrf.mxu0
    %v1066 = vadd.f32 %v259, %v1065
    %v1067 = vpop.f32.mrf.mxu0
    %v1068 = vadd.f32 %v263, %v1067
    %v1069 = vpop.f32.mrf.mxu0
    %v1070 = vadd.f32 %v259, %v1069
    %v1071 = vpop.f32.mrf.mxu0
    %v1072 = vadd.f32 %v263, %v1071
    %1073 = vmatprep.mubr.bf16.mxu0 %v137
    %1074 = vmatmul.mubr.bf16.gmra.mxu0 %v136
    %v1075 = vpop.f32.mrf.mxu0
    %v1076 = vadd.f32 %v259, %v1075
    %v1077 = vpop.f32.mrf.mxu0
    %v1078 = vadd.f32 %v263, %v1077
    %v1079 = vpop.f32.mrf.mxu0
    %v1080 = vadd.f32 %v259, %v1079
    %v1081 = vpop.f32.mrf.mxu0
    %v1082 = vadd.f32 %v263, %v1081
    %1083 = vmatprep.mubr.bf16.mxu0 %v139
    %1084 = vmatmul.mubr.bf16.gmra.mxu0 %v138
    %v1085 = vpop.f32.mrf.mxu0
    %v1086 = vadd.f32 %v259, %v1085
    %v1087 = vpop.f32.mrf.mxu0
    %v1088 = vadd.f32 %v263, %v1087
    %v1089 = vpop.f32.mrf.mxu0
    %v1090 = vadd.f32 %v259, %v1089
    %v1091 = vpop.f32.mrf.mxu0
    %v1092 = vadd.f32 %v263, %v1091
    %1093 = vmatprep.mubr.bf16.mxu0 %v141
    %1094 = vmatmul.mubr.bf16.gmra.mxu0 %v140
    %v1095 = vpop.f32.mrf.mxu0
    %v1096 = vadd.f32 %v259, %v1095
    %v1097 = vpop.f32.mrf.mxu0
    %v1098 = vadd.f32 %v263, %v1097
    %v1099 = vpop.f32.mrf.mxu0
    %v1100 = vadd.f32 %v259, %v1099
    %v1101 = vpop.f32.mrf.mxu0
    %v1102 = vadd.f32 %v263, %v1101
    %1103 = vmatprep.mubr.bf16.mxu0 %v143
    %1104 = vmatmul.mubr.bf16.gmra.mxu0 %v142
    %v1105 = vpop.f32.mrf.mxu0
    %v1106 = vadd.f32 %v259, %v1105
    %v1107 = vpop.f32.mrf.mxu0
    %v1108 = vadd.f32 %v263, %v1107
    %v1109 = vpop.f32.mrf.mxu0
    %v1110 = vadd.f32 %v259, %v1109
    %v1111 = vpop.f32.mrf.mxu0
    %v1112 = vadd.f32 %v263, %v1111
    %1113 = vmatprep.mubr.bf16.mxu0 %v145
    %1114 = vmatmul.mubr.bf16.gmra.mxu0 %v144
    %v1115 = vpop.f32.mrf.mxu0
    %v1116 = vadd.f32 %v259, %v1115
    %v1117 = vpop.f32.mrf.mxu0
    %v1118 = vadd.f32 %v263, %v1117
    %v1119 = vpop.f32.mrf.mxu0
    %v1120 = vadd.f32 %v259, %v1119
    %v1121 = vpop.f32.mrf.mxu0
    %v1122 = vadd.f32 %v263, %v1121
    %1123 = vmatprep.mubr.bf16.mxu0 %v147
    %1124 = vmatmul.mubr.bf16.gmra.mxu0 %v146
    %v1125 = vpop.f32.mrf.mxu0
    %v1126 = vadd.f32 %v259, %v1125
    %v1127 = vpop.f32.mrf.mxu0
    %v1128 = vadd.f32 %v263, %v1127
    %v1129 = vpop.f32.mrf.mxu0
    %v1130 = vadd.f32 %v259, %v1129
    %v1131 = vpop.f32.mrf.mxu0
    %v1132 = vadd.f32 %v263, %v1131
    %1133 = vmatprep.mubr.bf16.mxu0 %v149
    %1134 = vmatmul.mubr.bf16.gmra.mxu0 %v148
    %v1135 = vpop.f32.mrf.mxu0
    %v1136 = vadd.f32 %v259, %v1135
    %v1137 = vpop.f32.mrf.mxu0
    %v1138 = vadd.f32 %v263, %v1137
    %v1139 = vpop.f32.mrf.mxu0
    %v1140 = vadd.f32 %v259, %v1139
    %v1141 = vpop.f32.mrf.mxu0
    %v1142 = vadd.f32 %v263, %v1141
    %1143 = vdwg.mxu0
    %1144 = vmatprep.subr.bf16.mxu0 %v613
    %1145 = vmatpush1.bf16.msra.mxu0 %v612
    %1146 = vmatprep.subr.bf16.mxu0 %v607
    %1147 = vmatpush1.bf16.msra.mxu0 %v606
    %1148 = vmatprep.subr.bf16.mxu0 %v601
    %1149 = vmatpush1.bf16.msra.mxu0 %v600
    %1150 = vmatprep.subr.bf16.mxu0 %v595
    %1151 = vmatpush1.bf16.msra.mxu0 %v594
    %1152 = vmatprep.subr.bf16.mxu0 %v589
    %1153 = vmatpush1.bf16.msra.mxu0 %v588
    %1154 = vmatprep.subr.bf16.mxu0 %v583
    %1155 = vmatpush1.bf16.msra.mxu0 %v582
    %1156 = vmatprep.subr.bf16.mxu0 %v577
    %1157 = vmatpush1.bf16.msra.mxu0 %v576
    %1158 = vmatprep.subr.bf16.mxu0 %v571
    %1159 = vmatpush1.bf16.msra.mxu0 %v570
    %1160 = vmatprep.subr.bf16.mxu0 %v661
    %1161 = vmatpush2.bf16.msra.mxu0 %v660
    %1162 = vmatprep.subr.bf16.mxu0 %v655
    %1163 = vmatpush2.bf16.msra.mxu0 %v654
    %1164 = vmatprep.subr.bf16.mxu0 %v649
    %1165 = vmatpush2.bf16.msra.mxu0 %v648
    %1166 = vmatprep.subr.bf16.mxu0 %v643
    %1167 = vmatpush2.bf16.msra.mxu0 %v642
    %1168 = vmatprep.subr.bf16.mxu0 %v637
    %1169 = vmatpush2.bf16.msra.mxu0 %v636
    %1170 = vmatprep.subr.bf16.mxu0 %v631
    %1171 = vmatpush2.bf16.msra.mxu0 %v630
    %1172 = vmatprep.subr.bf16.mxu0 %v625
    %1173 = vmatpush2.bf16.msra.mxu0 %v624
    %1174 = vmatprep.subr.bf16.mxu0 %v619
    %1175 = vmatpush2.bf16.msra.mxu0 %v618
    %1176 = vmatprep.mubr.bf16.mxu0 %v119
    %1177 = vmatmul.mubr.bf16.gmra.mxu0 %v118
    %v1178 = vpop.f32.mrf.mxu0
    %v1179 = vadd.f32 %v267, %v1178
    %v1180 = vpop.f32.mrf.mxu0
    %v1181 = vadd.f32 %v271, %v1180
    %v1182 = vpop.f32.mrf.mxu0
    %v1183 = vadd.f32 %v267, %v1182
    %v1184 = vpop.f32.mrf.mxu0
    %v1185 = vadd.f32 %v271, %v1184
    %1186 = vmatprep.mubr.bf16.mxu0 %v121
    %1187 = vmatmul.mubr.bf16.gmra.mxu0 %v120
    %v1188 = vpop.f32.mrf.mxu0
    %v1189 = vadd.f32 %v267, %v1188
    %v1190 = vpop.f32.mrf.mxu0
    %v1191 = vadd.f32 %v271, %v1190
    %v1192 = vpop.f32.mrf.mxu0
    %v1193 = vadd.f32 %v267, %v1192
    %v1194 = vpop.f32.mrf.mxu0
    %v1195 = vadd.f32 %v271, %v1194
    %1196 = vmatprep.mubr.bf16.mxu0 %v123
    %1197 = vmatmul.mubr.bf16.gmra.mxu0 %v122
    %v1198 = vpop.f32.mrf.mxu0
    %v1199 = vadd.f32 %v267, %v1198
    %v1200 = vpop.f32.mrf.mxu0
    %v1201 = vadd.f32 %v271, %v1200
    %v1202 = vpop.f32.mrf.mxu0
    %v1203 = vadd.f32 %v267, %v1202
    %v1204 = vpop.f32.mrf.mxu0
    %v1205 = vadd.f32 %v271, %v1204
    %1206 = vmatprep.mubr.bf16.mxu0 %v125
    %1207 = vmatmul.mubr.bf16.gmra.mxu0 %v124
    %v1208 = vpop.f32.mrf.mxu0
    %v1209 = vadd.f32 %v267, %v1208
    %v1210 = vpop.f32.mrf.mxu0
    %v1211 = vadd.f32 %v271, %v1210
    %v1212 = vpop.f32.mrf.mxu0
    %v1213 = vadd.f32 %v267, %v1212
    %v1214 = vpop.f32.mrf.mxu0
    %v1215 = vadd.f32 %v271, %v1214
    %1216 = vmatprep.mubr.bf16.mxu0 %v127
    %1217 = vmatmul.mubr.bf16.gmra.mxu0 %v126
    %v1218 = vpop.f32.mrf.mxu0
    %v1219 = vadd.f32 %v267, %v1218
    %v1220 = vpop.f32.mrf.mxu0
    %v1221 = vadd.f32 %v271, %v1220
    %v1222 = vpop.f32.mrf.mxu0
    %v1223 = vadd.f32 %v267, %v1222
    %v1224 = vpop.f32.mrf.mxu0
    %v1225 = vadd.f32 %v271, %v1224
    %1226 = vmatprep.mubr.bf16.mxu0 %v129
    %1227 = vmatmul.mubr.bf16.gmra.mxu0 %v128
    %v1228 = vpop.f32.mrf.mxu0
    %v1229 = vadd.f32 %v267, %v1228
    %v1230 = vpop.f32.mrf.mxu0
    %v1231 = vadd.f32 %v271, %v1230
    %v1232 = vpop.f32.mrf.mxu0
    %v1233 = vadd.f32 %v267, %v1232
    %v1234 = vpop.f32.mrf.mxu0
    %v1235 = vadd.f32 %v271, %v1234
    %1236 = vmatprep.mubr.bf16.mxu0 %v131
    %1237 = vmatmul.mubr.bf16.gmra.mxu0 %v130
    %v1238 = vpop.f32.mrf.mxu0
    %v1239 = vadd.f32 %v267, %v1238
    %v1240 = vpop.f32.mrf.mxu0
    %v1241 = vadd.f32 %v271, %v1240
    %v1242 = vpop.f32.mrf.mxu0
    %v1243 = vadd.f32 %v267, %v1242
    %v1244 = vpop.f32.mrf.mxu0
    %v1245 = vadd.f32 %v271, %v1244
    %1246 = vmatprep.mubr.bf16.mxu0 %v133
    %1247 = vmatmul.mubr.bf16.gmra.mxu0 %v132
    %v1248 = vpop.f32.mrf.mxu0
    %v1249 = vadd.f32 %v267, %v1248
    %v1250 = vpop.f32.mrf.mxu0
    %v1251 = vadd.f32 %v271, %v1250
    %v1252 = vpop.f32.mrf.mxu0
    %v1253 = vadd.f32 %v267, %v1252
    %v1254 = vpop.f32.mrf.mxu0
    %v1255 = vadd.f32 %v271, %v1254
    %1256 = vmatprep.mubr.bf16.mxu0 %v135
    %1257 = vmatmul.mubr.bf16.gmra.mxu0 %v134
    %v1258 = vpop.f32.mrf.mxu0
    %v1259 = vadd.f32 %v267, %v1258
    %v1260 = vpop.f32.mrf.mxu0
    %v1261 = vadd.f32 %v271, %v1260
    %v1262 = vpop.f32.mrf.mxu0
    %v1263 = vadd.f32 %v267, %v1262
    %v1264 = vpop.f32.mrf.mxu0
    %v1265 = vadd.f32 %v271, %v1264
    %1266 = vmatprep.mubr.bf16.mxu0 %v137
    %1267 = vmatmul.mubr.bf16.gmra.mxu0 %v136
    %v1268 = vpop.f32.mrf.mxu0
    %v1269 = vadd.f32 %v267, %v1268
    %v1270 = vpop.f32.mrf.mxu0
    %v1271 = vadd.f32 %v271, %v1270
    %v1272 = vpop.f32.mrf.mxu0
    %v1273 = vadd.f32 %v267, %v1272
    %v1274 = vpop.f32.mrf.mxu0
    %v1275 = vadd.f32 %v271, %v1274
    %1276 = vmatprep.mubr.bf16.mxu0 %v139
    %1277 = vmatmul.mubr.bf16.gmra.mxu0 %v138
    %v1278 = vpop.f32.mrf.mxu0
    %v1279 = vadd.f32 %v267, %v1278
    %v1280 = vpop.f32.mrf.mxu0
    %v1281 = vadd.f32 %v271, %v1280
    %v1282 = vpop.f32.mrf.mxu0
    %v1283 = vadd.f32 %v267, %v1282
    %v1284 = vpop.f32.mrf.mxu0
    %v1285 = vadd.f32 %v271, %v1284
    %1286 = vmatprep.mubr.bf16.mxu0 %v141
    %1287 = vmatmul.mubr.bf16.gmra.mxu0 %v140
    %v1288 = vpop.f32.mrf.mxu0
    %v1289 = vadd.f32 %v267, %v1288
    %v1290 = vpop.f32.mrf.mxu0
    %v1291 = vadd.f32 %v271, %v1290
    %v1292 = vpop.f32.mrf.mxu0
    %v1293 = vadd.f32 %v267, %v1292
    %v1294 = vpop.f32.mrf.mxu0
    %v1295 = vadd.f32 %v271, %v1294
    %1296 = vmatprep.mubr.bf16.mxu0 %v143
    %1297 = vmatmul.mubr.bf16.gmra.mxu0 %v142
    %v1298 = vpop.f32.mrf.mxu0
    %v1299 = vadd.f32 %v267, %v1298
    %v1300 = vpop.f32.mrf.mxu0
    %v1301 = vadd.f32 %v271, %v1300
    %v1302 = vpop.f32.mrf.mxu0
    %v1303 = vadd.f32 %v267, %v1302
    %v1304 = vpop.f32.mrf.mxu0
    %v1305 = vadd.f32 %v271, %v1304
    %1306 = vmatprep.mubr.bf16.mxu0 %v145
    %1307 = vmatmul.mubr.bf16.gmra.mxu0 %v144
    %v1308 = vpop.f32.mrf.mxu0
    %v1309 = vadd.f32 %v267, %v1308
    %v1310 = vpop.f32.mrf.mxu0
    %v1311 = vadd.f32 %v271, %v1310
    %v1312 = vpop.f32.mrf.mxu0
    %v1313 = vadd.f32 %v267, %v1312
    %v1314 = vpop.f32.mrf.mxu0
    %v1315 = vadd.f32 %v271, %v1314
    %1316 = vmatprep.mubr.bf16.mxu0 %v147
    %1317 = vmatmul.mubr.bf16.gmra.mxu0 %v146
    %v1318 = vpop.f32.mrf.mxu0
    %v1319 = vadd.f32 %v267, %v1318
    %v1320 = vpop.f32.mrf.mxu0
    %v1321 = vadd.f32 %v271, %v1320
    %v1322 = vpop.f32.mrf.mxu0
    %v1323 = vadd.f32 %v267, %v1322
    %v1324 = vpop.f32.mrf.mxu0
    %v1325 = vadd.f32 %v271, %v1324
    %1326 = vmatprep.mubr.bf16.mxu0 %v149
    %1327 = vmatmul.mubr.bf16.gmra.mxu0 %v148
    %v1328 = vpop.f32.mrf.mxu0
    %v1329 = vadd.f32 %v267, %v1328
    %v1330 = vpop.f32.mrf.mxu0
    %v1331 = vadd.f32 %v271, %v1330
    %v1332 = vpop.f32.mrf.mxu0
    %v1333 = vadd.f32 %v267, %v1332
    %v1334 = vpop.f32.mrf.mxu0
    %v1335 = vadd.f32 %v271, %v1334
    %1336 = vdwg.mxu0
    %v1337 = vpack.c.bf16 %v797, %v793
    %v1338 = vpack.c.bf16 %v799, %v795
    %v1339 = vpack.c.bf16 %v990, %v986
    %v1340 = vpack.c.bf16 %v992, %v988
    %v1341 = vpack.c.bf16 %v1183, %v1179
    %v1342 = vpack.c.bf16 %v1185, %v1181
    %v1343 = vpack.c.bf16 %v807, %v803
    %v1344 = vpack.c.bf16 %v809, %v805
    %v1345 = vpack.c.bf16 %v1000, %v996
    %v1346 = vpack.c.bf16 %v1002, %v998
    %v1347 = vpack.c.bf16 %v1193, %v1189
    %v1348 = vpack.c.bf16 %v1195, %v1191
    %v1349 = vpack.c.bf16 %v817, %v813
    %v1350 = vpack.c.bf16 %v819, %v815
    %v1351 = vpack.c.bf16 %v1010, %v1006
    %v1352 = vpack.c.bf16 %v1012, %v1008
    %v1353 = vpack.c.bf16 %v1203, %v1199
    %v1354 = vpack.c.bf16 %v1205, %v1201
    %v1355 = vpack.c.bf16 %v827, %v823
    %v1356 = vpack.c.bf16 %v829, %v825
    %v1357 = vpack.c.bf16 %v1020, %v1016
    %v1358 = vpack.c.bf16 %v1022, %v1018
    %v1359 = vpack.c.bf16 %v1213, %v1209
    %v1360 = vpack.c.bf16 %v1215, %v1211
    %v1361 = vpack.c.bf16 %v837, %v833
    %v1362 = vpack.c.bf16 %v839, %v835
    %v1363 = vpack.c.bf16 %v1030, %v1026
    %v1364 = vpack.c.bf16 %v1032, %v1028
    %v1365 = vpack.c.bf16 %v1223, %v1219
    %v1366 = vpack.c.bf16 %v1225, %v1221
    %v1367 = vpack.c.bf16 %v847, %v843
    %v1368 = vpack.c.bf16 %v849, %v845
    %v1369 = vpack.c.bf16 %v1040, %v1036
    %v1370 = vpack.c.bf16 %v1042, %v1038
    %v1371 = vpack.c.bf16 %v1233, %v1229
    %v1372 = vpack.c.bf16 %v1235, %v1231
    %v1373 = vpack.c.bf16 %v857, %v853
    %v1374 = vpack.c.bf16 %v859, %v855
    %v1375 = vpack.c.bf16 %v1050, %v1046
    %v1376 = vpack.c.bf16 %v1052, %v1048
    %v1377 = vpack.c.bf16 %v1243, %v1239
    %v1378 = vpack.c.bf16 %v1245, %v1241
    %v1379 = vpack.c.bf16 %v867, %v863
    %v1380 = vpack.c.bf16 %v869, %v865
    %v1381 = vpack.c.bf16 %v1060, %v1056
    %v1382 = vpack.c.bf16 %v1062, %v1058
    %v1383 = vpack.c.bf16 %v1253, %v1249
    %v1384 = vpack.c.bf16 %v1255, %v1251
    %v1385 = vpack.c.bf16 %v877, %v873
    %v1386 = vpack.c.bf16 %v879, %v875
    %v1387 = vpack.c.bf16 %v1070, %v1066
    %v1388 = vpack.c.bf16 %v1072, %v1068
    %v1389 = vpack.c.bf16 %v1263, %v1259
    %v1390 = vpack.c.bf16 %v1265, %v1261
    %v1391 = vpack.c.bf16 %v887, %v883
    %v1392 = vpack.c.bf16 %v889, %v885
    %v1393 = vpack.c.bf16 %v1080, %v1076
    %v1394 = vpack.c.bf16 %v1082, %v1078
    %v1395 = vpack.c.bf16 %v1273, %v1269
    %v1396 = vpack.c.bf16 %v1275, %v1271
    %v1397 = vpack.c.bf16 %v897, %v893
    %v1398 = vpack.c.bf16 %v899, %v895
    %v1399 = vpack.c.bf16 %v1090, %v1086
    %v1400 = vpack.c.bf16 %v1092, %v1088
    %v1401 = vpack.c.bf16 %v1283, %v1279
    %v1402 = vpack.c.bf16 %v1285, %v1281
    %v1403 = vpack.c.bf16 %v907, %v903
    %v1404 = vpack.c.bf16 %v909, %v905
    %v1405 = vpack.c.bf16 %v1100, %v1096
    %v1406 = vpack.c.bf16 %v1102, %v1098
    %v1407 = vpack.c.bf16 %v1293, %v1289
    %v1408 = vpack.c.bf16 %v1295, %v1291
    %v1409 = vpack.c.bf16 %v917, %v913
    %v1410 = vpack.c.bf16 %v919, %v915
    %v1411 = vpack.c.bf16 %v1110, %v1106
    %v1412 = vpack.c.bf16 %v1112, %v1108
    %v1413 = vpack.c.bf16 %v1303, %v1299
    %v1414 = vpack.c.bf16 %v1305, %v1301
    %v1415 = vpack.c.bf16 %v927, %v923
    %v1416 = vpack.c.bf16 %v929, %v925
    %v1417 = vpack.c.bf16 %v1120, %v1116
    %v1418 = vpack.c.bf16 %v1122, %v1118
    %v1419 = vpack.c.bf16 %v1313, %v1309
    %v1420 = vpack.c.bf16 %v1315, %v1311
    %v1421 = vpack.c.bf16 %v937, %v933
    %v1422 = vpack.c.bf16 %v939, %v935
    %v1423 = vpack.c.bf16 %v1130, %v1126
    %v1424 = vpack.c.bf16 %v1132, %v1128
    %v1425 = vpack.c.bf16 %v1323, %v1319
    %v1426 = vpack.c.bf16 %v1325, %v1321
    %v1427 = vpack.c.bf16 %v947, %v943
    %v1428 = vpack.c.bf16 %v949, %v945
    %v1429 = vpack.c.bf16 %v1140, %v1136
    %v1430 = vpack.c.bf16 %v1142, %v1138
    %v1431 = vpack.c.bf16 %v1333, %v1329
    %v1432 = vpack.c.bf16 %v1335, %v1331
    %v1529 = vunpack.c.l.b16 %v1337
    %v1530 = vunpack.c.l.b16 %v1338
    %v1531 = vunpack.c.l.b16 %v1339
    %v1532 = vunpack.c.l.b16 %v1340
    %v1533 = vunpack.c.l.b16 %v1341
    %v1534 = vunpack.c.l.b16 %v1342
    %v1535 = vunpack.c.h.b16 %v1337
    %v1536 = vunpack.c.h.b16 %v1338
    %v1537 = vunpack.c.h.b16 %v1339
    %v1538 = vunpack.c.h.b16 %v1340
    %v1539 = vunpack.c.h.b16 %v1341
    %v1540 = vunpack.c.h.b16 %v1342
    %v1541 = vunpack.c.l.b16 %v1343
    %v1542 = vunpack.c.l.b16 %v1344
    %v1543 = vunpack.c.l.b16 %v1345
    %v1544 = vunpack.c.l.b16 %v1346
    %v1545 = vunpack.c.l.b16 %v1347
    %v1546 = vunpack.c.l.b16 %v1348
    %v1547 = vunpack.c.h.b16 %v1343
    %v1548 = vunpack.c.h.b16 %v1344
    %v1549 = vunpack.c.h.b16 %v1345
    %v1550 = vunpack.c.h.b16 %v1346
    %v1551 = vunpack.c.h.b16 %v1347
    %v1552 = vunpack.c.h.b16 %v1348
    %v1553 = vunpack.c.l.b16 %v1349
    %v1554 = vunpack.c.l.b16 %v1350
    %v1555 = vunpack.c.l.b16 %v1351
    %v1556 = vunpack.c.l.b16 %v1352
    %v1557 = vunpack.c.l.b16 %v1353
    %v1558 = vunpack.c.l.b16 %v1354
    %v1559 = vunpack.c.h.b16 %v1349
    %v1560 = vunpack.c.h.b16 %v1350
    %v1561 = vunpack.c.h.b16 %v1351
    %v1562 = vunpack.c.h.b16 %v1352
    %v1563 = vunpack.c.h.b16 %v1353
    %v1564 = vunpack.c.h.b16 %v1354
    %v1565 = vunpack.c.l.b16 %v1355
    %v1566 = vunpack.c.l.b16 %v1356
    %v1567 = vunpack.c.l.b16 %v1357
    %v1568 = vunpack.c.l.b16 %v1358
    %v1569 = vunpack.c.l.b16 %v1359
    %v1570 = vunpack.c.l.b16 %v1360
    %v1571 = vunpack.c.h.b16 %v1355
    %v1572 = vunpack.c.h.b16 %v1356
    %v1573 = vunpack.c.h.b16 %v1357
    %v1574 = vunpack.c.h.b16 %v1358
    %v1575 = vunpack.c.h.b16 %v1359
    %v1576 = vunpack.c.h.b16 %v1360
    %v1577 = vunpack.c.l.b16 %v1361
    %v1578 = vunpack.c.l.b16 %v1362
    %v1579 = vunpack.c.l.b16 %v1363
    %v1580 = vunpack.c.l.b16 %v1364
    %v1581 = vunpack.c.l.b16 %v1365
    %v1582 = vunpack.c.l.b16 %v1366
    %v1583 = vunpack.c.h.b16 %v1361
    %v1584 = vunpack.c.h.b16 %v1362
    %v1585 = vunpack.c.h.b16 %v1363
    %v1586 = vunpack.c.h.b16 %v1364
    %v1587 = vunpack.c.h.b16 %v1365
    %v1588 = vunpack.c.h.b16 %v1366
    %v1589 = vunpack.c.l.b16 %v1367
    %v1590 = vunpack.c.l.b16 %v1368
    %v1591 = vunpack.c.l.b16 %v1369
    %v1592 = vunpack.c.l.b16 %v1370
    %v1593 = vunpack.c.l.b16 %v1371
    %v1594 = vunpack.c.l.b16 %v1372
    %v1595 = vunpack.c.h.b16 %v1367
    %v1596 = vunpack.c.h.b16 %v1368
    %v1597 = vunpack.c.h.b16 %v1369
    %v1598 = vunpack.c.h.b16 %v1370
    %v1599 = vunpack.c.h.b16 %v1371
    %v1600 = vunpack.c.h.b16 %v1372
    %v1601 = vunpack.c.l.b16 %v1373
    %v1602 = vunpack.c.l.b16 %v1374
    %v1603 = vunpack.c.l.b16 %v1375
    %v1604 = vunpack.c.l.b16 %v1376
    %v1605 = vunpack.c.l.b16 %v1377
    %v1606 = vunpack.c.l.b16 %v1378
    %v1607 = vunpack.c.h.b16 %v1373
    %v1608 = vunpack.c.h.b16 %v1374
    %v1609 = vunpack.c.h.b16 %v1375
    %v1610 = vunpack.c.h.b16 %v1376
    %v1611 = vunpack.c.h.b16 %v1377
    %v1612 = vunpack.c.h.b16 %v1378
    %v1613 = vunpack.c.l.b16 %v1379
    %v1614 = vunpack.c.l.b16 %v1380
    %v1615 = vunpack.c.l.b16 %v1381
    %v1616 = vunpack.c.l.b16 %v1382
    %v1617 = vunpack.c.l.b16 %v1383
    %v1618 = vunpack.c.l.b16 %v1384
    %v1619 = vunpack.c.h.b16 %v1379
    %v1620 = vunpack.c.h.b16 %v1380
    %v1621 = vunpack.c.h.b16 %v1381
    %v1622 = vunpack.c.h.b16 %v1382
    %v1623 = vunpack.c.h.b16 %v1383
    %v1624 = vunpack.c.h.b16 %v1384
    %v1625 = vunpack.c.l.b16 %v1385
    %v1626 = vunpack.c.l.b16 %v1386
    %v1627 = vunpack.c.l.b16 %v1387
    %v1628 = vunpack.c.l.b16 %v1388
    %v1629 = vunpack.c.l.b16 %v1389
    %v1630 = vunpack.c.l.b16 %v1390
    %v1631 = vunpack.c.h.b16 %v1385
    %v1632 = vunpack.c.h.b16 %v1386
    %v1633 = vunpack.c.h.b16 %v1387
    %v1634 = vunpack.c.h.b16 %v1388
    %v1635 = vunpack.c.h.b16 %v1389
    %v1636 = vunpack.c.h.b16 %v1390
    %v1637 = vunpack.c.l.b16 %v1391
    %v1638 = vunpack.c.l.b16 %v1392
    %v1639 = vunpack.c.l.b16 %v1393
    %v1640 = vunpack.c.l.b16 %v1394
    %v1641 = vunpack.c.l.b16 %v1395
    %v1642 = vunpack.c.l.b16 %v1396
    %v1643 = vunpack.c.h.b16 %v1391
    %v1644 = vunpack.c.h.b16 %v1392
    %v1645 = vunpack.c.h.b16 %v1393
    %v1646 = vunpack.c.h.b16 %v1394
    %v1647 = vunpack.c.h.b16 %v1395
    %v1648 = vunpack.c.h.b16 %v1396
    %v1649 = vunpack.c.l.b16 %v1397
    %v1650 = vunpack.c.l.b16 %v1398
    %v1651 = vunpack.c.l.b16 %v1399
    %v1652 = vunpack.c.l.b16 %v1400
    %v1653 = vunpack.c.l.b16 %v1401
    %v1654 = vunpack.c.l.b16 %v1402
    %v1655 = vunpack.c.h.b16 %v1397
    %v1656 = vunpack.c.h.b16 %v1398
    %v1657 = vunpack.c.h.b16 %v1399
    %v1658 = vunpack.c.h.b16 %v1400
    %v1659 = vunpack.c.h.b16 %v1401
    %v1660 = vunpack.c.h.b16 %v1402
    %v1661 = vunpack.c.l.b16 %v1403
    %v1662 = vunpack.c.l.b16 %v1404
    %v1663 = vunpack.c.l.b16 %v1405
    %v1664 = vunpack.c.l.b16 %v1406
    %v1665 = vunpack.c.l.b16 %v1407
    %v1666 = vunpack.c.l.b16 %v1408
    %v1667 = vunpack.c.h.b16 %v1403
    %v1668 = vunpack.c.h.b16 %v1404
    %v1669 = vunpack.c.h.b16 %v1405
    %v1670 = vunpack.c.h.b16 %v1406
    %v1671 = vunpack.c.h.b16 %v1407
    %v1672 = vunpack.c.h.b16 %v1408
    %v1673 = vunpack.c.l.b16 %v1409
    %v1674 = vunpack.c.l.b16 %v1410
    %v1675 = vunpack.c.l.b16 %v1411
    %v1676 = vunpack.c.l.b16 %v1412
    %v1677 = vunpack.c.l.b16 %v1413
    %v1678 = vunpack.c.l.b16 %v1414
    %v1679 = vunpack.c.h.b16 %v1409
    %v1680 = vunpack.c.h.b16 %v1410
    %v1681 = vunpack.c.h.b16 %v1411
    %v1682 = vunpack.c.h.b16 %v1412
    %v1683 = vunpack.c.h.b16 %v1413
    %v1684 = vunpack.c.h.b16 %v1414
    %v1685 = vunpack.c.l.b16 %v1415
    %v1686 = vunpack.c.l.b16 %v1416
    %v1687 = vunpack.c.l.b16 %v1417
    %v1688 = vunpack.c.l.b16 %v1418
    %v1689 = vunpack.c.l.b16 %v1419
    %v1690 = vunpack.c.l.b16 %v1420
    %v1691 = vunpack.c.h.b16 %v1415
    %v1692 = vunpack.c.h.b16 %v1416
    %v1693 = vunpack.c.h.b16 %v1417
    %v1694 = vunpack.c.h.b16 %v1418
    %v1695 = vunpack.c.h.b16 %v1419
    %v1696 = vunpack.c.h.b16 %v1420
    %v1697 = vunpack.c.l.b16 %v1421
    %v1698 = vunpack.c.l.b16 %v1422
    %v1699 = vunpack.c.l.b16 %v1423
    %v1700 = vunpack.c.l.b16 %v1424
    %v1701 = vunpack.c.l.b16 %v1425
    %v1702 = vunpack.c.l.b16 %v1426
    %v1703 = vunpack.c.h.b16 %v1421
    %v1704 = vunpack.c.h.b16 %v1422
    %v1705 = vunpack.c.h.b16 %v1423
    %v1706 = vunpack.c.h.b16 %v1424
    %v1707 = vunpack.c.h.b16 %v1425
    %v1708 = vunpack.c.h.b16 %v1426
    %v1709 = vunpack.c.l.b16 %v1427
    %v1710 = vunpack.c.l.b16 %v1428
    %v1711 = vunpack.c.l.b16 %v1429
    %v1712 = vunpack.c.l.b16 %v1430
    %v1713 = vunpack.c.l.b16 %v1431
    %v1714 = vunpack.c.l.b16 %v1432
    %v1715 = vunpack.c.h.b16 %v1427
    %v1716 = vunpack.c.h.b16 %v1428
    %v1717 = vunpack.c.h.b16 %v1429
    %v1718 = vunpack.c.h.b16 %v1430
    %v1719 = vunpack.c.h.b16 %v1431
    %v1720 = vunpack.c.h.b16 %v1432
    %v1721 = vpack.c.b16 %v1530, %v1529
    %v1722 = vpack.c.b16 %v1532, %v1531
    %v1723 = vpack.c.b16 %v1534, %v1533
    %v1724 = vpack.c.b16 %v1536, %v1535
    %v1725 = vpack.c.b16 %v1538, %v1537
    %v1726 = vpack.c.b16 %v1540, %v1539
    %v1727 = vpack.c.b16 %v1542, %v1541
    %v1728 = vpack.c.b16 %v1544, %v1543
    %v1729 = vpack.c.b16 %v1546, %v1545
    %v1730 = vpack.c.b16 %v1548, %v1547
    %v1731 = vpack.c.b16 %v1550, %v1549
    %v1732 = vpack.c.b16 %v1552, %v1551
    %v1733 = vpack.c.b16 %v1554, %v1553
    %v1734 = vpack.c.b16 %v1556, %v1555
    %v1735 = vpack.c.b16 %v1558, %v1557
    %v1736 = vpack.c.b16 %v1560, %v1559
    %v1737 = vpack.c.b16 %v1562, %v1561
    %v1738 = vpack.c.b16 %v1564, %v1563
    %v1739 = vpack.c.b16 %v1566, %v1565
    %v1740 = vpack.c.b16 %v1568, %v1567
    %v1741 = vpack.c.b16 %v1570, %v1569
    %v1742 = vpack.c.b16 %v1572, %v1571
    %v1743 = vpack.c.b16 %v1574, %v1573
    %v1744 = vpack.c.b16 %v1576, %v1575
    %v1745 = vpack.c.b16 %v1578, %v1577
    %v1746 = vpack.c.b16 %v1580, %v1579
    %v1747 = vpack.c.b16 %v1582, %v1581
    %v1748 = vpack.c.b16 %v1584, %v1583
    %v1749 = vpack.c.b16 %v1586, %v1585
    %v1750 = vpack.c.b16 %v1588, %v1587
    %v1751 = vpack.c.b16 %v1590, %v1589
    %v1752 = vpack.c.b16 %v1592, %v1591
    %v1753 = vpack.c.b16 %v1594, %v1593
    %v1754 = vpack.c.b16 %v1596, %v1595
    %v1755 = vpack.c.b16 %v1598, %v1597
    %v1756 = vpack.c.b16 %v1600, %v1599
    %v1757 = vpack.c.b16 %v1602, %v1601
    %v1758 = vpack.c.b16 %v1604, %v1603
    %v1759 = vpack.c.b16 %v1606, %v1605
    %v1760 = vpack.c.b16 %v1608, %v1607
    %v1761 = vpack.c.b16 %v1610, %v1609
    %v1762 = vpack.c.b16 %v1612, %v1611
    %v1763 = vpack.c.b16 %v1614, %v1613
    %v1764 = vpack.c.b16 %v1616, %v1615
    %v1765 = vpack.c.b16 %v1618, %v1617
    %v1766 = vpack.c.b16 %v1620, %v1619
    %v1767 = vpack.c.b16 %v1622, %v1621
    %v1768 = vpack.c.b16 %v1624, %v1623
    %v1769 = vpack.c.b16 %v1626, %v1625
    %v1770 = vpack.c.b16 %v1628, %v1627
    %v1771 = vpack.c.b16 %v1630, %v1629
    %v1772 = vpack.c.b16 %v1632, %v1631
    %v1773 = vpack.c.b16 %v1634, %v1633
    %v1774 = vpack.c.b16 %v1636, %v1635
    %v1775 = vpack.c.b16 %v1638, %v1637
    %v1776 = vpack.c.b16 %v1640, %v1639
    %v1777 = vpack.c.b16 %v1642, %v1641
    %v1778 = vpack.c.b16 %v1644, %v1643
    %v1779 = vpack.c.b16 %v1646, %v1645
    %v1780 = vpack.c.b16 %v1648, %v1647
    %v1781 = vpack.c.b16 %v1650, %v1649
    %v1782 = vpack.c.b16 %v1652, %v1651
    %v1783 = vpack.c.b16 %v1654, %v1653
    %v1784 = vpack.c.b16 %v1656, %v1655
    %v1785 = vpack.c.b16 %v1658, %v1657
    %v1786 = vpack.c.b16 %v1660, %v1659
    %v1787 = vpack.c.b16 %v1662, %v1661
    %v1788 = vpack.c.b16 %v1664, %v1663
    %v1789 = vpack.c.b16 %v1666, %v1665
    %v1790 = vpack.c.b16 %v1668, %v1667
    %v1791 = vpack.c.b16 %v1670, %v1669
    %v1792 = vpack.c.b16 %v1672, %v1671
    %v1793 = vpack.c.b16 %v1674, %v1673
    %v1794 = vpack.c.b16 %v1676, %v1675
    %v1795 = vpack.c.b16 %v1678, %v1677
    %v1796 = vpack.c.b16 %v1680, %v1679
    %v1797 = vpack.c.b16 %v1682, %v1681
    %v1798 = vpack.c.b16 %v1684, %v1683
    %v1799 = vpack.c.b16 %v1686, %v1685
    %v1800 = vpack.c.b16 %v1688, %v1687
    %v1801 = vpack.c.b16 %v1690, %v1689
    %v1802 = vpack.c.b16 %v1692, %v1691
    %v1803 = vpack.c.b16 %v1694, %v1693
    %v1804 = vpack.c.b16 %v1696, %v1695
    %v1805 = vpack.c.b16 %v1698, %v1697
    %v1806 = vpack.c.b16 %v1700, %v1699
    %v1807 = vpack.c.b16 %v1702, %v1701
    %v1808 = vpack.c.b16 %v1704, %v1703
    %v1809 = vpack.c.b16 %v1706, %v1705
    %v1810 = vpack.c.b16 %v1708, %v1707
    %v1811 = vpack.c.b16 %v1710, %v1709
    %v1812 = vpack.c.b16 %v1712, %v1711
    %v1813 = vpack.c.b16 %v1714, %v1713
    %v1814 = vpack.c.b16 %v1716, %v1715
    %v1815 = vpack.c.b16 %v1718, %v1717
    %v1816 = vpack.c.b16 %v1720, %v1719
    %1913 = vst [vmem:[#allocation8] sm:$0xff] %v1721
    %1914 = vst [vmem:[#allocation8 + $0x8] sm:$0xff] %v1722
    %1915 = vst [vmem:[#allocation8 + $0x10] sm:$0xff] %v1723
    %1916 = vst [vmem:[#allocation8 + $0x18] sm:$0xff] %v1724
    %1917 = vst [vmem:[#allocation8 + $0x20] sm:$0xff] %v1725
    %1918 = vst [vmem:[#allocation8 + $0x28] sm:$0xff] %v1726
    %1919 = vst [vmem:[#allocation8 + $0x30] sm:$0xff] %v1727
    %1920 = vst [vmem:[#allocation8 + $0x38] sm:$0xff] %v1728
    %1921 = vst [vmem:[#allocation8 + $0x40] sm:$0xff] %v1729
    %1922 = vst [vmem:[#allocation8 + $0x48] sm:$0xff] %v1730
    %1923 = vst [vmem:[#allocation8 + $0x50] sm:$0xff] %v1731
    %1924 = vst [vmem:[#allocation8 + $0x58] sm:$0xff] %v1732
    %1925 = vst [vmem:[#allocation8 + $0x60] sm:$0xff] %v1733
    %1926 = vst [vmem:[#allocation8 + $0x68] sm:$0xff] %v1734
    %1927 = vst [vmem:[#allocation8 + $0x70] sm:$0xff] %v1735
    %1928 = vst [vmem:[#allocation8 + $0x78] sm:$0xff] %v1736
    %1929 = vst [vmem:[#allocation8 + $0x80] sm:$0xff] %v1737
    %1930 = vst [vmem:[#allocation8 + $0x88] sm:$0xff] %v1738
    %1931 = vst [vmem:[#allocation8 + $0x90] sm:$0xff] %v1739
    %1932 = vst [vmem:[#allocation8 + $0x98] sm:$0xff] %v1740
    %1933 = vst [vmem:[#allocation8 + $0xa0] sm:$0xff] %v1741
    %1934 = vst [vmem:[#allocation8 + $0xa8] sm:$0xff] %v1742
    %1935 = vst [vmem:[#allocation8 + $0xb0] sm:$0xff] %v1743
    %1936 = vst [vmem:[#allocation8 + $0xb8] sm:$0xff] %v1744
    %1937 = vst [vmem:[#allocation8 + $0xc0] sm:$0xff] %v1745
    %1938 = vst [vmem:[#allocation8 + $0xc8] sm:$0xff] %v1746
    %1939 = vst [vmem:[#allocation8 + $0xd0] sm:$0xff] %v1747
    %1940 = vst [vmem:[#allocation8 + $0xd8] sm:$0xff] %v1748
    %1941 = vst [vmem:[#allocation8 + $0xe0] sm:$0xff] %v1749
    %1942 = vst [vmem:[#allocation8 + $0xe8] sm:$0xff] %v1750
    %1943 = vst [vmem:[#allocation8 + $0xf0] sm:$0xff] %v1751
    %1944 = vst [vmem:[#allocation8 + $0xf8] sm:$0xff] %v1752
    %1945 = vst [vmem:[#allocation8 + $0x100] sm:$0xff] %v1753
    %1946 = vst [vmem:[#allocation8 + $0x108] sm:$0xff] %v1754
    %1947 = vst [vmem:[#allocation8 + $0x110] sm:$0xff] %v1755
    %1948 = vst [vmem:[#allocation8 + $0x118] sm:$0xff] %v1756
    %1949 = vst [vmem:[#allocation8 + $0x120] sm:$0xff] %v1757
    %1950 = vst [vmem:[#allocation8 + $0x128] sm:$0xff] %v1758
    %1951 = vst [vmem:[#allocation8 + $0x130] sm:$0xff] %v1759
    %1952 = vst [vmem:[#allocation8 + $0x138] sm:$0xff] %v1760
    %1953 = vst [vmem:[#allocation8 + $0x140] sm:$0xff] %v1761
    %1954 = vst [vmem:[#allocation8 + $0x148] sm:$0xff] %v1762
    %1955 = vst [vmem:[#allocation8 + $0x150] sm:$0xff] %v1763
    %1956 = vst [vmem:[#allocation8 + $0x158] sm:$0xff] %v1764
    %1957 = vst [vmem:[#allocation8 + $0x160] sm:$0xff] %v1765
    %1958 = vst [vmem:[#allocation8 + $0x168] sm:$0xff] %v1766
    %1959 = vst [vmem:[#allocation8 + $0x170] sm:$0xff] %v1767
    %1960 = vst [vmem:[#allocation8 + $0x178] sm:$0xff] %v1768
    %1961 = vst [vmem:[#allocation8 + $0x180] sm:$0xff] %v1769
    %1962 = vst [vmem:[#allocation8 + $0x188] sm:$0xff] %v1770
    %1963 = vst [vmem:[#allocation8 + $0x190] sm:$0xff] %v1771
    %1964 = vst [vmem:[#allocation8 + $0x198] sm:$0xff] %v1772
    %1965 = vst [vmem:[#allocation8 + $0x1a0] sm:$0xff] %v1773
    %1966 = vst [vmem:[#allocation8 + $0x1a8] sm:$0xff] %v1774
    %1967 = vst [vmem:[#allocation8 + $0x1b0] sm:$0xff] %v1775
    %1968 = vst [vmem:[#allocation8 + $0x1b8] sm:$0xff] %v1776
    %1969 = vst [vmem:[#allocation8 + $0x1c0] sm:$0xff] %v1777
    %1970 = vst [vmem:[#allocation8 + $0x1c8] sm:$0xff] %v1778
    %1971 = vst [vmem:[#allocation8 + $0x1d0] sm:$0xff] %v1779
    %1972 = vst [vmem:[#allocation8 + $0x1d8] sm:$0xff] %v1780
    %1973 = vst [vmem:[#allocation8 + $0x1e0] sm:$0xff] %v1781
    %1974 = vst [vmem:[#allocation8 + $0x1e8] sm:$0xff] %v1782
    %1975 = vst [vmem:[#allocation8 + $0x1f0] sm:$0xff] %v1783
    %1976 = vst [vmem:[#allocation8 + $0x1f8] sm:$0xff] %v1784
    %1977 = vst [vmem:[#allocation8 + $0x200] sm:$0xff] %v1785
    %1978 = vst [vmem:[#allocation8 + $0x208] sm:$0xff] %v1786
    %1979 = vst [vmem:[#allocation8 + $0x210] sm:$0xff] %v1787
    %1980 = vst [vmem:[#allocation8 + $0x218] sm:$0xff] %v1788
    %1981 = vst [vmem:[#allocation8 + $0x220] sm:$0xff] %v1789
    %1982 = vst [vmem:[#allocation8 + $0x228] sm:$0xff] %v1790
    %1983 = vst [vmem:[#allocation8 + $0x230] sm:$0xff] %v1791
    %1984 = vst [vmem:[#allocation8 + $0x238] sm:$0xff] %v1792
    %1985 = vst [vmem:[#allocation8 + $0x240] sm:$0xff] %v1793
    %1986 = vst [vmem:[#allocation8 + $0x248] sm:$0xff] %v1794
    %1987 = vst [vmem:[#allocation8 + $0x250] sm:$0xff] %v1795
    %1988 = vst [vmem:[#allocation8 + $0x258] sm:$0xff] %v1796
    %1989 = vst [vmem:[#allocation8 + $0x260] sm:$0xff] %v1797
    %1990 = vst [vmem:[#allocation8 + $0x268] sm:$0xff] %v1798
    %1991 = vst [vmem:[#allocation8 + $0x270] sm:$0xff] %v1799
    %1992 = vst [vmem:[#allocation8 + $0x278] sm:$0xff] %v1800
    %1993 = vst [vmem:[#allocation8 + $0x280] sm:$0xff] %v1801
    %1994 = vst [vmem:[#allocation8 + $0x288] sm:$0xff] %v1802
    %1995 = vst [vmem:[#allocation8 + $0x290] sm:$0xff] %v1803
    %1996 = vst [vmem:[#allocation8 + $0x298] sm:$0xff] %v1804
    %1997 = vst [vmem:[#allocation8 + $0x2a0] sm:$0xff] %v1805
    %1998 = vst [vmem:[#allocation8 + $0x2a8] sm:$0xff] %v1806
    %1999 = vst [vmem:[#allocation8 + $0x2b0] sm:$0xff] %v1807
    %2000 = vst [vmem:[#allocation8 + $0x2b8] sm:$0xff] %v1808
    %2001 = vst [vmem:[#allocation8 + $0x2c0] sm:$0xff] %v1809
    %2002 = vst [vmem:[#allocation8 + $0x2c8] sm:$0xff] %v1810
    %2003 = vst [vmem:[#allocation8 + $0x2d0] sm:$0xff] %v1811
    %2004 = vst [vmem:[#allocation8 + $0x2d8] sm:$0xff] %v1812
    %2005 = vst [vmem:[#allocation8 + $0x2e0] sm:$0xff] %v1813
    %2006 = vst [vmem:[#allocation8 + $0x2e8] sm:$0xff] %v1814
    %2007 = vst [vmem:[#allocation8 + $0x2f0] sm:$0xff] %v1815
    %2008 = vst [vmem:[#allocation8 + $0x2f8] sm:$0xff] %v1816
    // Predicated region
    $region26: #{tpu_custom_call.1} parent=1 // pred_check
      _
    $region27: #{tpu_custom_call.1} parent=1 // pred_check_branch
      %2010 = sbr.rel (0) target = $region29
    $region28: #{tpu_custom_call.1} parent=1 // pred_region
      %s2012 = ssub.s32 12288, 12288
      %2013 = vsyncadd [#allocation4], %s2012
      %s2014 = sshll.u32 [#allocation8], 4
      %s2015 = int_to_ptr.vmem [resolvable:$true] %s2014
      %2020 = dma.vmem_to_hbm [thread:$0]  %s2015, 12288, %s3, [#allocation4], 384, 384, 24
    $region29: #{tpu_custom_call.1} parent=1 // pred_fallthru
      _
    // Predicated region
    $region30: #{tpu_custom_call.1} parent=1 // pred_check
      _
    $region31: #{tpu_custom_call.1} parent=1 // pred_check_branch
      %2022 = sbr.rel (0) target = $region33
    $region32: #{tpu_custom_call.1} parent=1 // pred_region
      %2023 = dma.done [#allocation4], 12288
    $region33: #{tpu_custom_call.1} parent=1 // pred_fallthru
      _
    %2024 = vsyncpa [#allocation3], 1
    %2025 = vsyncpa [#allocation6], 1
    %2026 = vsyncpa [#allocation4], 1

</llo_original>
